<compile_context>
chip_gen: v7x
topology: tpu7x:2x2x1
jax: 0.10.0
libtpu: 0.0.40
codegen_flags: <defaults>
</compile_context>

<pallas_src>
import functools

import jax
import jax.numpy as jnp
import numpy as np
from jax import lax
from jax.experimental import pallas as pl
from jax.experimental.pallas import tpu as pltpu


def _attention_kernel(q_ref, k_ref, v_ref,
                      wq_ref, bq_ref,
                      wk_ref, bk_ref,
                      wv_ref, bv_ref,
                      wo_ref, bo_ref,
                      o_ref,
                      *, batch_block, seq_len, num_heads, dim_head):
    B_blk, T, D, H = batch_block, seq_len, dim_head, num_heads
    BT = B_blk * T
    cdt = jnp.bfloat16          # MXU operand dtype (accumulation stays f32)

    # Inputs arrive pre-cast to bf16.  Flatten the batch block so the
    # projection matmuls see M = B_blk*T rows (better MXU fill for short T).
    xq = q_ref[...].reshape(BT, -1)
    xk = k_ref[...].reshape(BT, -1)
    xv = v_ref[...].reshape(BT, -1)

    # Q/K/V projections: (BT, dim) @ (dim, H*D) + bias, f32 accumulation.
    # `scale` is already folded into wq/bq by the wrapper.
    qp = jnp.dot(xq, wq_ref[...], preferred_element_type=jnp.float32) + bq_ref[...]
    kp = jnp.dot(xk, wk_ref[...], preferred_element_type=jnp.float32) + bk_ref[...]
    vp = jnp.dot(xv, wv_ref[...], preferred_element_type=jnp.float32) + bv_ref[...]

    # Back to (B_blk, T, H*D) for per-batch attention, bf16 for the MXU.
    qp = qp.reshape(B_blk, T, H * D).astype(cdt)
    kp = kp.reshape(B_blk, T, H * D).astype(cdt)
    vp = vp.reshape(B_blk, T, H * D).astype(cdt)

    head_outs = []
    for h in range(H):
        sl = slice(h * D, (h + 1) * D)
        qh = qp[:, :, sl]       # (B_blk, T, D) bf16
        kh = kp[:, :, sl]
        vh = vp[:, :, sl]

        # Scores: contract the last dim of both operands directly -- no
        # explicit (T, D) -> (D, T) transpose is materialized.
        s = lax.dot_general(
            qh, kh,
            dimension_numbers=(((2,), (2,)), ((0,), (0,))),
            preferred_element_type=jnp.float32)        # (B_blk, T, T) f32

        # Numerically stable softmax in f32.  The normalization happens after
        # the PV matmul: l is the row-sum of the unnormalized exp.
        s = s - jnp.max(s, axis=-1, keepdims=True)
        p = jnp.exp(s)
        l = jnp.sum(p, axis=-1, keepdims=True)         # (B_blk, T, 1)

        # (B_blk, T, T) @ (B_blk, T, D) -> (B_blk, T, D), f32 accumulation.
        ho = lax.dot_general(
            p.astype(cdt), vh,
            dimension_numbers=(((2,), (1,)), ((0,), (0,))),
            preferred_element_type=jnp.float32)

        # Normalize after PV: (T, D) multiplies instead of (T, T); the
        # approximate reciprocal lands on the otherwise-idle EUP slot.
        ho = ho * pl.reciprocal(l, approx=True)
        head_outs.append(ho.astype(cdt))

    # Fused output projection: one matmul with K = H*D (full MXU contraction
    # depth), single output write, no per-head accumulator RMWs.
    heads = jnp.concatenate(head_outs, axis=-1).reshape(BT, H * D)
    out = jnp.dot(heads, wo_ref[...], preferred_element_type=jnp.float32) + bo_ref[...]
    o_ref[...] = out.reshape(B_blk, T, -1).astype(o_ref.dtype)


def _vmem_capacity_bytes():
    """Physical VMEM per TensorCore; conservative 64 MiB if unqueryable."""
    try:
        info = pltpu.get_tpu_info()
        cap = getattr(info, "vmem_capacity_bytes", None)
        if cap:
            return int(cap)
    except Exception:
        pass
    return 64 * 1024 * 1024


def _vmem_bytes(batch_block, T, dim, hd, num_heads, weight_buffers=2):
    """Working-set estimate, including T*T scores and f32 projection buffers."""
    bt = batch_block * T
    D = hd // num_heads
    act = 2 * 3 * bt * dim * 2                       # bf16 q/k/v blocks, 2x buffered
    outb = 2 * bt * dim * 4                          # output block, 2x buffered
    wts = weight_buffers * (3 * dim * hd + hd * dim) * 2   # bf16 weights
    bias = 2 * (3 * hd + dim) * 4                    # f32 biases
    proj = 3 * bt * hd * (4 + 2)                     # f32 projections + bf16 copies
    scores = 3 * batch_block * T * T * 4             # s / p / temp (per head, f32)
    heads = num_heads * batch_block * T * D * 2 + bt * hd * 2  # head outs + concat
    final = 2 * bt * dim * 4                         # f32 out + cast
    return act + outb + wts + bias + proj + scores + heads + final


def _choose_batch_block(B, T, dim, hd, num_heads, budget_bytes):
    """Largest divisor of B that keeps >=2 grid steps and fits the VMEM budget."""
    cap = max(1, B // 2)      # >=2 grid steps: megacore sharding + DMA/compute overlap
    best = 1
    for cand in range(1, cap + 1):
        if B % cand == 0 and _vmem_bytes(cand, T, dim, hd, num_heads) <= budget_bytes:
            best = cand
    return best


def _build_attention_call(kernel, *, B, T, dim, hd, batch_block, out_dtype,
                          vmem_limit, weight_mode):
    def const_spec(shape):
        imap = lambda b: (0, 0)
        if weight_mode is not None:
            # Grid-invariant operands: single-buffered (never re-fetched).
            return pl.BlockSpec(shape, imap, pipeline_mode=weight_mode)
        return pl.BlockSpec(shape, imap)

    seq_spec = pl.BlockSpec((batch_block, T, dim), lambda b: (b, 0, 0))
    w_in_spec = const_spec((dim, hd))
    b_in_spec = const_spec((1, hd))
    w_out_spec = const_spec((hd, dim))
    b_out_spec = const_spec((1, dim))

    return pl.pallas_call(
        kernel,
        out_shape=jax.ShapeDtypeStruct((B, T, dim), out_dtype),
        grid_spec=pltpu.PrefetchScalarGridSpec(
            num_scalar_prefetch=0,
            grid=(B // batch_block,),
            in_specs=[seq_spec, seq_spec, seq_spec,
                      w_in_spec, b_in_spec,
                      w_in_spec, b_in_spec,
                      w_in_spec, b_in_spec,
                      w_out_spec, b_out_spec],
            out_specs=seq_spec,
        ),
        compiler_params=pltpu.CompilerParams(
            dimension_semantics=("parallel",),
            vmem_limit_bytes=vmem_limit),
    )


def softmax_attention(q, k, v, params, *, num_heads, dim_head, batch_block=None):
    """q, k, v: (B, T, dim). params: dict of transposed f32 weights/biases."""
    B, T, dim = q.shape
    hd = num_heads * dim_head
    scale = dim_head ** (-0.5)
    out_dtype = q.dtype

    # Keep the (B_blk, T, dim) <-> (BT, dim) reshapes layout-preserving
    # (a multiple of 16 is ideal for the bf16 intermediates).
    assert T % 8 == 0, "seq_len must be a multiple of 8 (sublane pack)"

    cap_bytes = _vmem_capacity_bytes()
    if batch_block is None:
        batch_block = _choose_batch_block(
            B, T, dim, hd, num_heads, budget_bytes=int(0.6 * cap_bytes))
    assert B % batch_block == 0

    # Cast activations + weights to bf16 once (MXU-native, halves DMA bytes);
    # fold the attention scale into W_q / b_q.  Biases stay f32 (added post-MXU).
    cdt = jnp.bfloat16
    qb = q.astype(cdt)
    kb = k.astype(cdt)
    vb = v.astype(cdt)
    wq = (params["wq"] * scale).astype(cdt)
    bq = (params["bq"] * scale).astype(jnp.float32)
    wk = params["wk"].astype(cdt)
    bk = params["bk"].astype(jnp.float32)
    wv = params["wv"].astype(cdt)
    bv = params["bv"].astype(jnp.float32)
    wo = params["wo"].astype(cdt)
    bo = params["bo"].astype(jnp.float32)

    kernel = functools.partial(
        _attention_kernel,
        batch_block=batch_block, seq_len=T,
        num_heads=num_heads, dim_head=dim_head)

    # VMEM limit from the real working set, capped below physical VMEM
    # (meaningful on v7x's 64 MiB as well as v5e/v6e's 128 MiB).
    est = _vmem_bytes(batch_block, T, dim, hd, num_heads)
    vmem_limit = int(min(max(est * 3 // 2, 32 * 1024 * 1024),
                         int(cap_bytes * 0.85),
                         100 * 1024 * 1024))

    args = (qb, kb, vb, wq, bq, wk, bk, wv, bv, wo, bo)

    # Prefer single-buffered grid-invariant weights; gracefully fall back to
    # the default double-buffered BlockSpecs if the installed Pallas version
    # does not support pipeline_mode / Buffered(1).
    modes = []
    buffered_cls = getattr(pl, "Buffered", None)
    if buffered_cls is not None:
        try:
            modes.append(buffered_cls(1))
        except Exception:
            pass
    modes.append(None)

    last_err = None
    for mode in modes:
        try:
            call = _build_attention_call(
                kernel, B=B, T=T, dim=dim, hd=hd, batch_block=batch_block,
                out_dtype=out_dtype, vmem_limit=vmem_limit, weight_mode=mode)
            return call(*args)
        except Exception as err:    # fall back to default buffering
            last_err = err
    raise last_err


def _init_linear(key, in_features, out_features):
    """PyTorch-style init; W transposed to (in, out), b as (1, out)."""
    k_w, k_b = jax.random.split(key)
    bound = 1.0 / np.sqrt(in_features)
    w = jax.random.uniform(k_w, (in_features, out_features),
                           minval=-bound, maxval=bound, dtype=jnp.float32)
    b = jax.random.uniform(k_b, (1, out_features),
                           minval=-bound, maxval=bound, dtype=jnp.float32)
    return w, b


def _reference(q, k, v, params, *, num_heads, dim_head):
    """Pure-JAX f32 reference mirroring the PyTorch forward."""
    scale = dim_head ** (-0.5)
    B, T, _ = q.shape

    def proj(x, w, b):
        return x @ w + b  # (B, T, H*D)

    qp = proj(q, params["wq"], params["bq"])
    kp = proj(k, params["wk"], params["bk"])
    vp = proj(v, params["wv"], params["bv"])

    def split_heads(x):
        return x.reshape(B, T, num_heads, dim_head).transpose(0, 2, 1, 3)

    qh, kh, vh = split_heads(qp), split_heads(kp), split_heads(vp)
    scores = jnp.einsum("bhid,bhjd->bhij", qh * scale, kh)
    probs = jax.nn.softmax(scores, axis=-1)
    out = jnp.einsum("bhij,bhjd->bhid", probs, vh)
    out = out.transpose(0, 2, 1, 3).reshape(B, T, num_heads * dim_head)
    return out @ params["wo"] + params["bo"]


if __name__ == "__main__":
    # Small, lane-friendly shapes consistent with the module.
    B, T, dim = 2, 16, 128
    num_heads, dim_head = 2, 64
    hd = num_heads * dim_head

    key = jax.random.PRNGKey(0)
    k_q, k_k, k_v, k_wq, k_wk, k_wv, k_wo = jax.random.split(key, 7)

    q = jax.random.normal(k_q, (B, T, dim), dtype=jnp.float32)
    k = jax.random.normal(k_k, (B, T, dim), dtype=jnp.float32)
    v = jax.random.normal(k_v, (B, T, dim), dtype=jnp.float32)

    wq, bq = _init_linear(k_wq, dim, hd)
    wk, bk = _init_linear(k_wk, dim, hd)
    wv, bv = _init_linear(k_wv, dim, hd)
    wo, bo = _init_linear(k_wo, hd, dim)
    params = dict(wq=wq, bq=bq, wk=wk, bk=bk, wv=wv, bv=bv, wo=wo, bo=bo)

    out = softmax_attention(q, k, v, params,
                            num_heads=num_heads, dim_head=dim_head)
    out = jax.block_until_ready(out)

    ref = _reference(q, k, v, params, num_heads=num_heads, dim_head=dim_head)
    # Tolerances loosened vs the f32 reference: the kernel uses bf16 MXU
    # operands (f32 accumulation) and an approx-reciprocal softmax denominator.
    np.testing.assert_allclose(np.asarray(out), np.asarray(ref),
                               rtol=5e-2, atol=5e-2)
    print("KERNEL_OK")
</pallas_src>

<mosaic_0001>
module attributes {stable_mosaic.version = 11 : i64} {
  func.func @_attention_kernel(%arg0: i32, %arg1: memref<1x16x128xbf16, #tpu.memory_space<vmem>>, %arg2: memref<1x16x128xbf16, #tpu.memory_space<vmem>>, %arg3: memref<1x16x128xbf16, #tpu.memory_space<vmem>>, %arg4: memref<128x128xbf16, #tpu.memory_space<vmem>>, %arg5: memref<1x128xf32, #tpu.memory_space<vmem>>, %arg6: memref<128x128xbf16, #tpu.memory_space<vmem>>, %arg7: memref<1x128xf32, #tpu.memory_space<vmem>>, %arg8: memref<128x128xbf16, #tpu.memory_space<vmem>>, %arg9: memref<1x128xf32, #tpu.memory_space<vmem>>, %arg10: memref<128x128xbf16, #tpu.memory_space<vmem>>, %arg11: memref<1x128xf32, #tpu.memory_space<vmem>>, %arg12: memref<1x16x128xf32, #tpu.memory_space<vmem>>) attributes {dimension_semantics = [#tpu.dimension_semantics<parallel>], iteration_bounds = array<i64: 2>, scalar_prefetch = 0 : i64, scratch_operands = 0 : i64, tpu.core_type = #tpu.core_type<tc>, window_params = [{transform_indices = @transform_0, window_bounds = array<i64: 1, 16, 128>}, {transform_indices = @transform_1, window_bounds = array<i64: 1, 16, 128>}, {transform_indices = @transform_2, window_bounds = array<i64: 1, 16, 128>}, {pipeline_mode = #tpu.pipeline_mode<synchronous>, transform_indices = @transform_3, window_bounds = array<i64: 128, 128>}, {pipeline_mode = #tpu.pipeline_mode<synchronous>, transform_indices = @transform_4, window_bounds = array<i64: 1, 128>}, {pipeline_mode = #tpu.pipeline_mode<synchronous>, transform_indices = @transform_5, window_bounds = array<i64: 128, 128>}, {pipeline_mode = #tpu.pipeline_mode<synchronous>, transform_indices = @transform_6, window_bounds = array<i64: 1, 128>}, {pipeline_mode = #tpu.pipeline_mode<synchronous>, transform_indices = @transform_7, window_bounds = array<i64: 128, 128>}, {pipeline_mode = #tpu.pipeline_mode<synchronous>, transform_indices = @transform_8, window_bounds = array<i64: 1, 128>}, {pipeline_mode = #tpu.pipeline_mode<synchronous>, transform_indices = @transform_9, window_bounds = array<i64: 128, 128>}, {pipeline_mode = #tpu.pipeline_mode<synchronous>, transform_indices = @transform_10, window_bounds = array<i64: 1, 128>}, {transform_indices = @transform_11, window_bounds = array<i64: 1, 16, 128>}]} {
    %c0 = arith.constant 0 : index
    %c0_0 = arith.constant 0 : index
    %c0_1 = arith.constant 0 : index
    %0 = vector.load %arg1[%c0, %c0_0, %c0_1] : memref<1x16x128xbf16, #tpu.memory_space<vmem>>, vector<1x16x128xbf16>
    %1 = vector.shape_cast %0 : vector<1x16x128xbf16> to vector<16x128xbf16>
    %c0_2 = arith.constant 0 : index
    %c0_3 = arith.constant 0 : index
    %c0_4 = arith.constant 0 : index
    %2 = vector.load %arg2[%c0_2, %c0_3, %c0_4] : memref<1x16x128xbf16, #tpu.memory_space<vmem>>, vector<1x16x128xbf16>
    %3 = vector.shape_cast %2 : vector<1x16x128xbf16> to vector<16x128xbf16>
    %c0_5 = arith.constant 0 : index
    %c0_6 = arith.constant 0 : index
    %c0_7 = arith.constant 0 : index
    %4 = vector.load %arg3[%c0_5, %c0_6, %c0_7] : memref<1x16x128xbf16, #tpu.memory_space<vmem>>, vector<1x16x128xbf16>
    %5 = vector.shape_cast %4 : vector<1x16x128xbf16> to vector<16x128xbf16>
    %c0_8 = arith.constant 0 : index
    %c0_9 = arith.constant 0 : index
    %6 = vector.load %arg4[%c0_8, %c0_9] : memref<128x128xbf16, #tpu.memory_space<vmem>>, vector<128x128xbf16>
    %cst = arith.constant dense<0.000000e+00> : vector<16x128xf32>
    %7 = tpu.matmul %1, %6, %cst {dimension_numbers = #tpu.dot_dimension_numbers<[1], [0], [0], [1], [0, 0, 1, 1], [], []>} : vector<16x128xbf16>, vector<128x128xbf16>, vector<16x128xf32> -> vector<16x128xf32>
    %c0_10 = arith.constant 0 : index
    %c0_11 = arith.constant 0 : index
    %8 = vector.load %arg5[%c0_10, %c0_11] : memref<1x128xf32, #tpu.memory_space<vmem>>, vector<1x128xf32>
    %9 = vector.broadcast %8 : vector<1x128xf32> to vector<16x128xf32>
    %10 = arith.addf %7, %9 : vector<16x128xf32>
    %c0_12 = arith.constant 0 : index
    %c0_13 = arith.constant 0 : index
    %11 = vector.load %arg6[%c0_12, %c0_13] : memref<128x128xbf16, #tpu.memory_space<vmem>>, vector<128x128xbf16>
    %cst_14 = arith.constant dense<0.000000e+00> : vector<16x128xf32>
    %12 = tpu.matmul %3, %11, %cst_14 {dimension_numbers = #tpu.dot_dimension_numbers<[1], [0], [0], [1], [0, 0, 1, 1], [], []>} : vector<16x128xbf16>, vector<128x128xbf16>, vector<16x128xf32> -> vector<16x128xf32>
    %c0_15 = arith.constant 0 : index
    %c0_16 = arith.constant 0 : index
    %13 = vector.load %arg7[%c0_15, %c0_16] : memref<1x128xf32, #tpu.memory_space<vmem>>, vector<1x128xf32>
    %14 = vector.broadcast %13 : vector<1x128xf32> to vector<16x128xf32>
    %15 = arith.addf %12, %14 : vector<16x128xf32>
    %c0_17 = arith.constant 0 : index
    %c0_18 = arith.constant 0 : index
    %16 = vector.load %arg8[%c0_17, %c0_18] : memref<128x128xbf16, #tpu.memory_space<vmem>>, vector<128x128xbf16>
    %cst_19 = arith.constant dense<0.000000e+00> : vector<16x128xf32>
    %17 = tpu.matmul %5, %16, %cst_19 {dimension_numbers = #tpu.dot_dimension_numbers<[1], [0], [0], [1], [0, 0, 1, 1], [], []>} : vector<16x128xbf16>, vector<128x128xbf16>, vector<16x128xf32> -> vector<16x128xf32>
    %c0_20 = arith.constant 0 : index
    %c0_21 = arith.constant 0 : index
    %18 = vector.load %arg9[%c0_20, %c0_21] : memref<1x128xf32, #tpu.memory_space<vmem>>, vector<1x128xf32>
    %19 = vector.broadcast %18 : vector<1x128xf32> to vector<16x128xf32>
    %20 = arith.addf %17, %19 : vector<16x128xf32>
    %21 = vector.shape_cast %10 : vector<16x128xf32> to vector<1x16x128xf32>
    %22 = arith.truncf %21 : vector<1x16x128xf32> to vector<1x16x128xbf16>
    %23 = vector.shape_cast %15 : vector<16x128xf32> to vector<1x16x128xf32>
    %24 = arith.truncf %23 : vector<1x16x128xf32> to vector<1x16x128xbf16>
    %25 = vector.shape_cast %20 : vector<16x128xf32> to vector<1x16x128xf32>
    %26 = arith.truncf %25 : vector<1x16x128xf32> to vector<1x16x128xbf16>
    %27 = vector.extract_strided_slice %22 {offsets = [0, 0, 0], sizes = [1, 16, 64], strides = [1, 1, 1]} : vector<1x16x128xbf16> to vector<1x16x64xbf16>
    %28 = vector.extract_strided_slice %24 {offsets = [0, 0, 0], sizes = [1, 16, 64], strides = [1, 1, 1]} : vector<1x16x128xbf16> to vector<1x16x64xbf16>
    %29 = vector.extract_strided_slice %26 {offsets = [0, 0, 0], sizes = [1, 16, 64], strides = [1, 1, 1]} : vector<1x16x128xbf16> to vector<1x16x64xbf16>
    %cst_22 = arith.constant dense<0.000000e+00> : vector<1x16x16xf32>
    %30 = tpu.matmul %27, %28, %cst_22 {dimension_numbers = #tpu.dot_dimension_numbers<[2], [2], [1], [1], [0, 0, 0, 1, 1, 1], [0], [0]>} : vector<1x16x64xbf16>, vector<1x16x64xbf16>, vector<1x16x16xf32> -> vector<1x16x16xf32>
    %cst_23 = arith.constant dense<0xFF800000> : vector<1x16xf32>
    %31 = vector.multi_reduction <maximumf>, %30, %cst_23 [2] : vector<1x16x16xf32> to vector<1x16xf32>
    %32 = vector.shape_cast %31 : vector<1x16xf32> to vector<1x16x1xf32>
    %33 = vector.broadcast %32 : vector<1x16x1xf32> to vector<1x16x16xf32>
    %34 = arith.subf %30, %33 : vector<1x16x16xf32>
    %35 = math.exp %34 : vector<1x16x16xf32>
    %cst_24 = arith.constant dense<0.000000e+00> : vector<1x16xf32>
    %36 = vector.multi_reduction <add>, %35, %cst_24 [2] : vector<1x16x16xf32> to vector<1x16xf32>
    %37 = vector.shape_cast %36 : vector<1x16xf32> to vector<1x16x1xf32>
    %38 = arith.truncf %35 : vector<1x16x16xf32> to vector<1x16x16xbf16>
    %cst_25 = arith.constant dense<0.000000e+00> : vector<1x16x64xf32>
    %39 = tpu.matmul %38, %29, %cst_25 {dimension_numbers = #tpu.dot_dimension_numbers<[2], [1], [1], [2], [0, 0, 0, 1, 1, 2], [0], [0]>} : vector<1x16x16xbf16>, vector<1x16x64xbf16>, vector<1x16x64xf32> -> vector<1x16x64xf32>
    %40 = tpu.reciprocal %37 {approx = true} : vector<1x16x1xf32> -> vector<1x16x1xf32>
    %41 = vector.broadcast %40 : vector<1x16x1xf32> to vector<1x16x64xf32>
    %42 = arith.mulf %39, %41 : vector<1x16x64xf32>
    %43 = arith.truncf %42 : vector<1x16x64xf32> to vector<1x16x64xbf16>
    %44 = vector.extract_strided_slice %22 {offsets = [0, 0, 64], sizes = [1, 16, 64], strides = [1, 1, 1]} : vector<1x16x128xbf16> to vector<1x16x64xbf16>
    %45 = vector.extract_strided_slice %24 {offsets = [0, 0, 64], sizes = [1, 16, 64], strides = [1, 1, 1]} : vector<1x16x128xbf16> to vector<1x16x64xbf16>
    %46 = vector.extract_strided_slice %26 {offsets = [0, 0, 64], sizes = [1, 16, 64], strides = [1, 1, 1]} : vector<1x16x128xbf16> to vector<1x16x64xbf16>
    %cst_26 = arith.constant dense<0.000000e+00> : vector<1x16x16xf32>
    %47 = tpu.matmul %44, %45, %cst_26 {dimension_numbers = #tpu.dot_dimension_numbers<[2], [2], [1], [1], [0, 0, 0, 1, 1, 1], [0], [0]>} : vector<1x16x64xbf16>, vector<1x16x64xbf16>, vector<1x16x16xf32> -> vector<1x16x16xf32>
    %cst_27 = arith.constant dense<0xFF800000> : vector<1x16xf32>
    %48 = vector.multi_reduction <maximumf>, %47, %cst_27 [2] : vector<1x16x16xf32> to vector<1x16xf32>
    %49 = vector.shape_cast %48 : vector<1x16xf32> to vector<1x16x1xf32>
    %50 = vector.broadcast %49 : vector<1x16x1xf32> to vector<1x16x16xf32>
    %51 = arith.subf %47, %50 : vector<1x16x16xf32>
    %52 = math.exp %51 : vector<1x16x16xf32>
    %cst_28 = arith.constant dense<0.000000e+00> : vector<1x16xf32>
    %53 = vector.multi_reduction <add>, %52, %cst_28 [2] : vector<1x16x16xf32> to vector<1x16xf32>
    %54 = vector.shape_cast %53 : vector<1x16xf32> to vector<1x16x1xf32>
    %55 = arith.truncf %52 : vector<1x16x16xf32> to vector<1x16x16xbf16>
    %cst_29 = arith.constant dense<0.000000e+00> : vector<1x16x64xf32>
    %56 = tpu.matmul %55, %46, %cst_29 {dimension_numbers = #tpu.dot_dimension_numbers<[2], [1], [1], [2], [0, 0, 0, 1, 1, 2], [0], [0]>} : vector<1x16x16xbf16>, vector<1x16x64xbf16>, vector<1x16x64xf32> -> vector<1x16x64xf32>
    %57 = tpu.reciprocal %54 {approx = true} : vector<1x16x1xf32> -> vector<1x16x1xf32>
    %58 = vector.broadcast %57 : vector<1x16x1xf32> to vector<1x16x64xf32>
    %59 = arith.mulf %56, %58 : vector<1x16x64xf32>
    %60 = arith.truncf %59 : vector<1x16x64xf32> to vector<1x16x64xbf16>
    %61 = tpu.concatenate %43, %60 in 2 : vector<1x16x64xbf16>, vector<1x16x64xbf16> -> vector<1x16x128xbf16>
    %62 = vector.shape_cast %61 : vector<1x16x128xbf16> to vector<16x128xbf16>
    %c0_30 = arith.constant 0 : index
    %c0_31 = arith.constant 0 : index
    %63 = vector.load %arg10[%c0_30, %c0_31] : memref<128x128xbf16, #tpu.memory_space<vmem>>, vector<128x128xbf16>
    %cst_32 = arith.constant dense<0.000000e+00> : vector<16x128xf32>
    %64 = tpu.matmul %62, %63, %cst_32 {dimension_numbers = #tpu.dot_dimension_numbers<[1], [0], [0], [1], [0, 0, 1, 1], [], []>} : vector<16x128xbf16>, vector<128x128xbf16>, vector<16x128xf32> -> vector<16x128xf32>
    %c0_33 = arith.constant 0 : index
    %c0_34 = arith.constant 0 : index
    %65 = vector.load %arg11[%c0_33, %c0_34] : memref<1x128xf32, #tpu.memory_space<vmem>>, vector<1x128xf32>
    %66 = vector.broadcast %65 : vector<1x128xf32> to vector<16x128xf32>
    %67 = arith.addf %64, %66 : vector<16x128xf32>
    %68 = vector.shape_cast %67 : vector<16x128xf32> to vector<1x16x128xf32>
    %c0_35 = arith.constant 0 : index
    %c0_36 = arith.constant 0 : index
    %c0_37 = arith.constant 0 : index
    %69 = vector.load %arg12[%c0_35, %c0_36, %c0_37] : memref<1x16x128xf32, #tpu.memory_space<vmem>>, vector<1x16x128xf32>
    tpu.vector_store %arg12[%c0_35, %c0_36, %c0_37], %68 {strides = array<i32>} : memref<1x16x128xf32, #tpu.memory_space<vmem>>, vector<1x16x128xf32>,
    return
  }
  func.func @transform_0(%arg0: i32) -> (i32, i32, i32) {
    %c0_i32 = arith.constant 0 : i32
    %c0_i32_0 = arith.constant 0 : i32
    %c0_i32_1 = arith.constant 0 : i32
    return %arg0, %c0_i32, %c0_i32_0 : i32, i32, i32
  }
  func.func @transform_1(%arg0: i32) -> (i32, i32, i32) {
    %c0_i32 = arith.constant 0 : i32
    %c0_i32_0 = arith.constant 0 : i32
    %c0_i32_1 = arith.constant 0 : i32
    return %arg0, %c0_i32, %c0_i32_0 : i32, i32, i32
  }
  func.func @transform_2(%arg0: i32) -> (i32, i32, i32) {
    %c0_i32 = arith.constant 0 : i32
    %c0_i32_0 = arith.constant 0 : i32
    %c0_i32_1 = arith.constant 0 : i32
    return %arg0, %c0_i32, %c0_i32_0 : i32, i32, i32
  }
  func.func @transform_3(%arg0: i32) -> (i32, i32) {
    %c0_i32 = arith.constant 0 : i32
    %c0_i32_0 = arith.constant 0 : i32
    %c0_i32_1 = arith.constant 0 : i32
    return %c0_i32, %c0_i32_0 : i32, i32
  }
  func.func @transform_4(%arg0: i32) -> (i32, i32) {
    %c0_i32 = arith.constant 0 : i32
    %c0_i32_0 = arith.constant 0 : i32
    %c0_i32_1 = arith.constant 0 : i32
    return %c0_i32, %c0_i32_0 : i32, i32
  }
  func.func @transform_5(%arg0: i32) -> (i32, i32) {
    %c0_i32 = arith.constant 0 : i32
    %c0_i32_0 = arith.constant 0 : i32
    %c0_i32_1 = arith.constant 0 : i32
    return %c0_i32, %c0_i32_0 : i32, i32
  }
  func.func @transform_6(%arg0: i32) -> (i32, i32) {
    %c0_i32 = arith.constant 0 : i32
    %c0_i32_0 = arith.constant 0 : i32
    %c0_i32_1 = arith.constant 0 : i32
    return %c0_i32, %c0_i32_0 : i32, i32
  }
  func.func @transform_7(%arg0: i32) -> (i32, i32) {
    %c0_i32 = arith.constant 0 : i32
    %c0_i32_0 = arith.constant 0 : i32
    %c0_i32_1 = arith.constant 0 : i32
    return %c0_i32, %c0_i32_0 : i32, i32
  }
  func.func @transform_8(%arg0: i32) -> (i32, i32) {
    %c0_i32 = arith.constant 0 : i32
    %c0_i32_0 = arith.constant 0 : i32
    %c0_i32_1 = arith.constant 0 : i32
    return %c0_i32, %c0_i32_0 : i32, i32
  }
  func.func @transform_9(%arg0: i32) -> (i32, i32) {
    %c0_i32 = arith.constant 0 : i32
    %c0_i32_0 = arith.constant 0 : i32
    %c0_i32_1 = arith.constant 0 : i32
    return %c0_i32, %c0_i32_0 : i32, i32
  }
  func.func @transform_10(%arg0: i32) -> (i32, i32) {
    %c0_i32 = arith.constant 0 : i32
    %c0_i32_0 = arith.constant 0 : i32
    %c0_i32_1 = arith.constant 0 : i32
    return %c0_i32, %c0_i32_0 : i32, i32
  }
  func.func @transform_11(%arg0: i32) -> (i32, i32, i32) {
    %c0_i32 = arith.constant 0 : i32
    %c0_i32_0 = arith.constant 0 : i32
    %c0_i32_1 = arith.constant 0 : i32
    return %arg0, %c0_i32, %c0_i32_0 : i32, i32, i32
  }
}

module attributes {stable_mosaic.version = 11 : i64} {
  func.func @_attention_kernel(%arg0: i32, %arg1: memref<1x16x128xbf16, #tpu.memory_space<vmem>>, %arg2: memref<1x16x128xbf16, #tpu.memory_space<vmem>>, %arg3: memref<1x16x128xbf16, #tpu.memory_space<vmem>>, %arg4: memref<128x128xbf16, #tpu.memory_space<vmem>>, %arg5: memref<1x128xf32, #tpu.memory_space<vmem>>, %arg6: memref<128x128xbf16, #tpu.memory_space<vmem>>, %arg7: memref<1x128xf32, #tpu.memory_space<vmem>>, %arg8: memref<128x128xbf16, #tpu.memory_space<vmem>>, %arg9: memref<1x128xf32, #tpu.memory_space<vmem>>, %arg10: memref<128x128xbf16, #tpu.memory_space<vmem>>, %arg11: memref<1x128xf32, #tpu.memory_space<vmem>>, %arg12: memref<1x16x128xf32, #tpu.memory_space<vmem>>) attributes {dimension_semantics = [#tpu.dimension_semantics<parallel>], iteration_bounds = array<i64: 2>, scalar_prefetch = 0 : i64, scratch_operands = 0 : i64, tpu.core_type = #tpu.core_type<tc>, window_params = [{transform_indices = @transform_0, window_bounds = array<i64: 1, 16, 128>}, {transform_indices = @transform_1, window_bounds = array<i64: 1, 16, 128>}, {transform_indices = @transform_2, window_bounds = array<i64: 1, 16, 128>}, {pipeline_mode = #tpu.pipeline_mode<synchronous>, transform_indices = @transform_3, window_bounds = array<i64: 128, 128>}, {pipeline_mode = #tpu.pipeline_mode<synchronous>, transform_indices = @transform_4, window_bounds = array<i64: 1, 128>}, {pipeline_mode = #tpu.pipeline_mode<synchronous>, transform_indices = @transform_5, window_bounds = array<i64: 128, 128>}, {pipeline_mode = #tpu.pipeline_mode<synchronous>, transform_indices = @transform_6, window_bounds = array<i64: 1, 128>}, {pipeline_mode = #tpu.pipeline_mode<synchronous>, transform_indices = @transform_7, window_bounds = array<i64: 128, 128>}, {pipeline_mode = #tpu.pipeline_mode<synchronous>, transform_indices = @transform_8, window_bounds = array<i64: 1, 128>}, {pipeline_mode = #tpu.pipeline_mode<synchronous>, transform_indices = @transform_9, window_bounds = array<i64: 128, 128>}, {pipeline_mode = #tpu.pipeline_mode<synchronous>, transform_indices = @transform_10, window_bounds = array<i64: 1, 128>}, {transform_indices = @transform_11, window_bounds = array<i64: 1, 16, 128>}]} {
    %c0 = arith.constant 0 : index
    %c0_0 = arith.constant 0 : index
    %c0_1 = arith.constant 0 : index
    %0 = vector.load %arg1[%c0, %c0_0, %c0_1] : memref<1x16x128xbf16, #tpu.memory_space<vmem>>, vector<1x16x128xbf16>
    %1 = vector.shape_cast %0 : vector<1x16x128xbf16> to vector<16x128xbf16>
    %c0_2 = arith.constant 0 : index
    %c0_3 = arith.constant 0 : index
    %c0_4 = arith.constant 0 : index
    %2 = vector.load %arg2[%c0_2, %c0_3, %c0_4] : memref<1x16x128xbf16, #tpu.memory_space<vmem>>, vector<1x16x128xbf16>
    %3 = vector.shape_cast %2 : vector<1x16x128xbf16> to vector<16x128xbf16>
    %c0_5 = arith.constant 0 : index
    %c0_6 = arith.constant 0 : index
    %c0_7 = arith.constant 0 : index
    %4 = vector.load %arg3[%c0_5, %c0_6, %c0_7] : memref<1x16x128xbf16, #tpu.memory_space<vmem>>, vector<1x16x128xbf16>
    %5 = vector.shape_cast %4 : vector<1x16x128xbf16> to vector<16x128xbf16>
    %c0_8 = arith.constant 0 : index
    %c0_9 = arith.constant 0 : index
    %6 = vector.load %arg4[%c0_8, %c0_9] : memref<128x128xbf16, #tpu.memory_space<vmem>>, vector<128x128xbf16>
    %cst = arith.constant dense<0.000000e+00> : vector<16x128xf32>
    %7 = tpu.matmul %1, %6, %cst {dimension_numbers = #tpu.dot_dimension_numbers<[1], [0], [0], [1], [0, 0, 1, 1], [], []>} : vector<16x128xbf16>, vector<128x128xbf16>, vector<16x128xf32> -> vector<16x128xf32>
    %c0_10 = arith.constant 0 : index
    %c0_11 = arith.constant 0 : index
    %8 = vector.load %arg5[%c0_10, %c0_11] : memref<1x128xf32, #tpu.memory_space<vmem>>, vector<1x128xf32>
    %9 = vector.broadcast %8 : vector<1x128xf32> to vector<16x128xf32>
    %10 = arith.addf %7, %9 : vector<16x128xf32>
    %c0_12 = arith.constant 0 : index
    %c0_13 = arith.constant 0 : index
    %11 = vector.load %arg6[%c0_12, %c0_13] : memref<128x128xbf16, #tpu.memory_space<vmem>>, vector<128x128xbf16>
    %cst_14 = arith.constant dense<0.000000e+00> : vector<16x128xf32>
    %12 = tpu.matmul %3, %11, %cst_14 {dimension_numbers = #tpu.dot_dimension_numbers<[1], [0], [0], [1], [0, 0, 1, 1], [], []>} : vector<16x128xbf16>, vector<128x128xbf16>, vector<16x128xf32> -> vector<16x128xf32>
    %c0_15 = arith.constant 0 : index
    %c0_16 = arith.constant 0 : index
    %13 = vector.load %arg7[%c0_15, %c0_16] : memref<1x128xf32, #tpu.memory_space<vmem>>, vector<1x128xf32>
    %14 = vector.broadcast %13 : vector<1x128xf32> to vector<16x128xf32>
    %15 = arith.addf %12, %14 : vector<16x128xf32>
    %c0_17 = arith.constant 0 : index
    %c0_18 = arith.constant 0 : index
    %16 = vector.load %arg8[%c0_17, %c0_18] : memref<128x128xbf16, #tpu.memory_space<vmem>>, vector<128x128xbf16>
    %cst_19 = arith.constant dense<0.000000e+00> : vector<16x128xf32>
    %17 = tpu.matmul %5, %16, %cst_19 {dimension_numbers = #tpu.dot_dimension_numbers<[1], [0], [0], [1], [0, 0, 1, 1], [], []>} : vector<16x128xbf16>, vector<128x128xbf16>, vector<16x128xf32> -> vector<16x128xf32>
    %c0_20 = arith.constant 0 : index
    %c0_21 = arith.constant 0 : index
    %18 = vector.load %arg9[%c0_20, %c0_21] : memref<1x128xf32, #tpu.memory_space<vmem>>, vector<1x128xf32>
    %19 = vector.broadcast %18 : vector<1x128xf32> to vector<16x128xf32>
    %20 = arith.addf %17, %19 : vector<16x128xf32>
    %21 = vector.shape_cast %10 : vector<16x128xf32> to vector<1x16x128xf32>
    %22 = arith.truncf %21 : vector<1x16x128xf32> to vector<1x16x128xbf16>
    %23 = vector.shape_cast %15 : vector<16x128xf32> to vector<1x16x128xf32>
    %24 = arith.truncf %23 : vector<1x16x128xf32> to vector<1x16x128xbf16>
    %25 = vector.shape_cast %20 : vector<16x128xf32> to vector<1x16x128xf32>
    %26 = arith.truncf %25 : vector<1x16x128xf32> to vector<1x16x128xbf16>
    %27 = vector.extract_strided_slice %22 {offsets = [0, 0, 0], sizes = [1, 16, 64], strides = [1, 1, 1]} : vector<1x16x128xbf16> to vector<1x16x64xbf16>
    %28 = vector.extract_strided_slice %24 {offsets = [0, 0, 0], sizes = [1, 16, 64], strides = [1, 1, 1]} : vector<1x16x128xbf16> to vector<1x16x64xbf16>
    %29 = vector.extract_strided_slice %26 {offsets = [0, 0, 0], sizes = [1, 16, 64], strides = [1, 1, 1]} : vector<1x16x128xbf16> to vector<1x16x64xbf16>
    %cst_22 = arith.constant dense<0.000000e+00> : vector<1x16x16xf32>
    %30 = tpu.matmul %27, %28, %cst_22 {dimension_numbers = #tpu.dot_dimension_numbers<[2], [2], [1], [1], [0, 0, 0, 1, 1, 1], [0], [0]>} : vector<1x16x64xbf16>, vector<1x16x64xbf16>, vector<1x16x16xf32> -> vector<1x16x16xf32>
    %cst_23 = arith.constant dense<0xFF800000> : vector<1x16xf32>
    %31 = vector.multi_reduction <maximumf>, %30, %cst_23 [2] : vector<1x16x16xf32> to vector<1x16xf32>
    %32 = vector.shape_cast %31 : vector<1x16xf32> to vector<1x16x1xf32>
    %33 = vector.broadcast %32 : vector<1x16x1xf32> to vector<1x16x16xf32>
    %34 = arith.subf %30, %33 : vector<1x16x16xf32>
    %35 = math.exp %34 : vector<1x16x16xf32>
    %cst_24 = arith.constant dense<0.000000e+00> : vector<1x16xf32>
    %36 = vector.multi_reduction <add>, %35, %cst_24 [2] : vector<1x16x16xf32> to vector<1x16xf32>
    %37 = vector.shape_cast %36 : vector<1x16xf32> to vector<1x16x1xf32>
    %38 = arith.truncf %35 : vector<1x16x16xf32> to vector<1x16x16xbf16>
    %cst_25 = arith.constant dense<0.000000e+00> : vector<1x16x64xf32>
    %39 = tpu.matmul %38, %29, %cst_25 {dimension_numbers = #tpu.dot_dimension_numbers<[2], [1], [1], [2], [0, 0, 0, 1, 1, 2], [0], [0]>} : vector<1x16x16xbf16>, vector<1x16x64xbf16>, vector<1x16x64xf32> -> vector<1x16x64xf32>
    %40 = tpu.reciprocal %37 {approx = true} : vector<1x16x1xf32> -> vector<1x16x1xf32>
    %41 = vector.broadcast %40 : vector<1x16x1xf32> to vector<1x16x64xf32>
    %42 = arith.mulf %39, %41 : vector<1x16x64xf32>
    %43 = arith.truncf %42 : vector<1x16x64xf32> to vector<1x16x64xbf16>
    %44 = vector.extract_strided_slice %22 {offsets = [0, 0, 64], sizes = [1, 16, 64], strides = [1, 1, 1]} : vector<1x16x128xbf16> to vector<1x16x64xbf16>
    %45 = vector.extract_strided_slice %24 {offsets = [0, 0, 64], sizes = [1, 16, 64], strides = [1, 1, 1]} : vector<1x16x128xbf16> to vector<1x16x64xbf16>
    %46 = vector.extract_strided_slice %26 {offsets = [0, 0, 64], sizes = [1, 16, 64], strides = [1, 1, 1]} : vector<1x16x128xbf16> to vector<1x16x64xbf16>
    %cst_26 = arith.constant dense<0.000000e+00> : vector<1x16x16xf32>
    %47 = tpu.matmul %44, %45, %cst_26 {dimension_numbers = #tpu.dot_dimension_numbers<[2], [2], [1], [1], [0, 0, 0, 1, 1, 1], [0], [0]>} : vector<1x16x64xbf16>, vector<1x16x64xbf16>, vector<1x16x16xf32> -> vector<1x16x16xf32>
    %cst_27 = arith.constant dense<0xFF800000> : vector<1x16xf32>
    %48 = vector.multi_reduction <maximumf>, %47, %cst_27 [2] : vector<1x16x16xf32> to vector<1x16xf32>
    %49 = vector.shape_cast %48 : vector<1x16xf32> to vector<1x16x1xf32>
    %50 = vector.broadcast %49 : vector<1x16x1xf32> to vector<1x16x16xf32>
    %51 = arith.subf %47, %50 : vector<1x16x16xf32>
    %52 = math.exp %51 : vector<1x16x16xf32>
    %cst_28 = arith.constant dense<0.000000e+00> : vector<1x16xf32>
    %53 = vector.multi_reduction <add>, %52, %cst_28 [2] : vector<1x16x16xf32> to vector<1x16xf32>
    %54 = vector.shape_cast %53 : vector<1x16xf32> to vector<1x16x1xf32>
    %55 = arith.truncf %52 : vector<1x16x16xf32> to vector<1x16x16xbf16>
    %cst_29 = arith.constant dense<0.000000e+00> : vector<1x16x64xf32>
    %56 = tpu.matmul %55, %46, %cst_29 {dimension_numbers = #tpu.dot_dimension_numbers<[2], [1], [1], [2], [0, 0, 0, 1, 1, 2], [0], [0]>} : vector<1x16x16xbf16>, vector<1x16x64xbf16>, vector<1x16x64xf32> -> vector<1x16x64xf32>
    %57 = tpu.reciprocal %54 {approx = true} : vector<1x16x1xf32> -> vector<1x16x1xf32>
    %58 = vector.broadcast %57 : vector<1x16x1xf32> to vector<1x16x64xf32>
    %59 = arith.mulf %56, %58 : vector<1x16x64xf32>
    %60 = arith.truncf %59 : vector<1x16x64xf32> to vector<1x16x64xbf16>
    %61 = tpu.concatenate %43, %60 in 2 : vector<1x16x64xbf16>, vector<1x16x64xbf16> -> vector<1x16x128xbf16>
    %62 = vector.shape_cast %61 : vector<1x16x128xbf16> to vector<16x128xbf16>
    %c0_30 = arith.constant 0 : index
    %c0_31 = arith.constant 0 : index
    %63 = vector.load %arg10[%c0_30, %c0_31] : memref<128x128xbf16, #tpu.memory_space<vmem>>, vector<128x128xbf16>
    %cst_32 = arith.constant dense<0.000000e+00> : vector<16x128xf32>
    %64 = tpu.matmul %62, %63, %cst_32 {dimension_numbers = #tpu.dot_dimension_numbers<[1], [0], [0], [1], [0, 0, 1, 1], [], []>} : vector<16x128xbf16>, vector<128x128xbf16>, vector<16x128xf32> -> vector<16x128xf32>
    %c0_33 = arith.constant 0 : index
    %c0_34 = arith.constant 0 : index
    %65 = vector.load %arg11[%c0_33, %c0_34] : memref<1x128xf32, #tpu.memory_space<vmem>>, vector<1x128xf32>
    %66 = vector.broadcast %65 : vector<1x128xf32> to vector<16x128xf32>
    %67 = arith.addf %64, %66 : vector<16x128xf32>
    %68 = vector.shape_cast %67 : vector<16x128xf32> to vector<1x16x128xf32>
    %c0_35 = arith.constant 0 : index
    %c0_36 = arith.constant 0 : index
    %c0_37 = arith.constant 0 : index
    %69 = vector.load %arg12[%c0_35, %c0_36, %c0_37] : memref<1x16x128xf32, #tpu.memory_space<vmem>>, vector<1x16x128xf32>
    tpu.vector_store %arg12[%c0_35, %c0_36, %c0_37], %68 {strides = array<i32>} : memref<1x16x128xf32, #tpu.memory_space<vmem>>, vector<1x16x128xf32>,
    return
  }
  func.func @transform_0(%arg0: i32) -> (i32, i32, i32) {
    %c0_i32 = arith.constant 0 : i32
    %c0_i32_0 = arith.constant 0 : i32
    %c0_i32_1 = arith.constant 0 : i32
    return %arg0, %c0_i32, %c0_i32_0 : i32, i32, i32
  }
  func.func @transform_1(%arg0: i32) -> (i32, i32, i32) {
    %c0_i32 = arith.constant 0 : i32
    %c0_i32_0 = arith.constant 0 : i32
    %c0_i32_1 = arith.constant 0 : i32
    return %arg0, %c0_i32, %c0_i32_0 : i32, i32, i32
  }
  func.func @transform_2(%arg0: i32) -> (i32, i32, i32) {
    %c0_i32 = arith.constant 0 : i32
    %c0_i32_0 = arith.constant 0 : i32
    %c0_i32_1 = arith.constant 0 : i32
    return %arg0, %c0_i32, %c0_i32_0 : i32, i32, i32
  }
  func.func @transform_3(%arg0: i32) -> (i32, i32) {
    %c0_i32 = arith.constant 0 : i32
    %c0_i32_0 = arith.constant 0 : i32
    %c0_i32_1 = arith.constant 0 : i32
    return %c0_i32, %c0_i32_0 : i32, i32
  }
  func.func @transform_4(%arg0: i32) -> (i32, i32) {
    %c0_i32 = arith.constant 0 : i32
    %c0_i32_0 = arith.constant 0 : i32
    %c0_i32_1 = arith.constant 0 : i32
    return %c0_i32, %c0_i32_0 : i32, i32
  }
  func.func @transform_5(%arg0: i32) -> (i32, i32) {
    %c0_i32 = arith.constant 0 : i32
    %c0_i32_0 = arith.constant 0 : i32
    %c0_i32_1 = arith.constant 0 : i32
    return %c0_i32, %c0_i32_0 : i32, i32
  }
  func.func @transform_6(%arg0: i32) -> (i32, i32) {
    %c0_i32 = arith.constant 0 : i32
    %c0_i32_0 = arith.constant 0 : i32
    %c0_i32_1 = arith.constant 0 : i32
    return %c0_i32, %c0_i32_0 : i32, i32
  }
  func.func @transform_7(%arg0: i32) -> (i32, i32) {
    %c0_i32 = arith.constant 0 : i32
    %c0_i32_0 = arith.constant 0 : i32
    %c0_i32_1 = arith.constant 0 : i32
    return %c0_i32, %c0_i32_0 : i32, i32
  }
  func.func @transform_8(%arg0: i32) -> (i32, i32) {
    %c0_i32 = arith.constant 0 : i32
    %c0_i32_0 = arith.constant 0 : i32
    %c0_i32_1 = arith.constant 0 : i32
    return %c0_i32, %c0_i32_0 : i32, i32
  }
  func.func @transform_9(%arg0: i32) -> (i32, i32) {
    %c0_i32 = arith.constant 0 : i32
    %c0_i32_0 = arith.constant 0 : i32
    %c0_i32_1 = arith.constant 0 : i32
    return %c0_i32, %c0_i32_0 : i32, i32
  }
  func.func @transform_10(%arg0: i32) -> (i32, i32) {
    %c0_i32 = arith.constant 0 : i32
    %c0_i32_0 = arith.constant 0 : i32
    %c0_i32_1 = arith.constant 0 : i32
    return %c0_i32, %c0_i32_0 : i32, i32
  }
  func.func @transform_11(%arg0: i32) -> (i32, i32, i32) {
    %c0_i32 = arith.constant 0 : i32
    %c0_i32_0 = arith.constant 0 : i32
    %c0_i32_1 = arith.constant 0 : i32
    return %arg0, %c0_i32, %c0_i32_0 : i32, i32, i32
  }
}

</mosaic_0001>

<llo_original>
// kernel: tpu_custom_call.1
$region0: #{tpu_custom_call.1}
  #allocation0 [shape = 'u32[]', space=smem, size = 0x4, offset = 0x4, fixed_abs, tag = 'smem constant byte address 0x4 - core index']
  #allocation1 [shape = 'u32[144,128]{1,0:T(1,128)}', space=vmem, size = 0x12000, scoped, tag = 'internal scratch']
  %s0 = inlined_call_operand.hbm [shape: bf16[2,16,128], index: 0, kind: input, shape index: {}]
  %s1 = inlined_call_operand.hbm [shape: bf16[2,16,128], index: 1, kind: input, shape index: {}]
  %s2 = inlined_call_operand.hbm [shape: bf16[2,16,128], index: 2, kind: input, shape index: {}]
  %s3 = inlined_call_operand.hbm [shape: bf16[128,128], index: 3, kind: input, shape index: {}]
  %s4 = inlined_call_operand.vmem [shape: f32[1,128], index: 4, kind: input, shape index: {}]
  %s5 = inlined_call_operand.hbm [shape: bf16[128,128], index: 5, kind: input, shape index: {}]
  %s6 = inlined_call_operand.vmem [shape: f32[1,128], index: 6, kind: input, shape index: {}]
  %s7 = inlined_call_operand.hbm [shape: bf16[128,128], index: 7, kind: input, shape index: {}]
  %s8 = inlined_call_operand.vmem [shape: f32[1,128], index: 8, kind: input, shape index: {}]
  %s9 = inlined_call_operand.hbm [shape: bf16[128,128], index: 9, kind: input, shape index: {}]
  %s10 = inlined_call_operand.vmem [shape: f32[1,128], index: 10, kind: input, shape index: {}]
  %s11 = inlined_call_operand.hbm [shape: f32[2,16,128], index: 11, kind: output, shape index: {}]
  %s12 = sld [smem:[#allocation0]]
  $region105: #{tpu_custom_call.1} parent=0
    _
  %s14 = ssub.s32 1, %s12
  %s15 = scalar_select 0, %s14, %s12
  $region1: #{tpu_custom_call.1} parent=0
    #allocation2 [shape = 'u8[8192]{0}', space=vmem, size = 0x2000, scoped, tag = 'input window, operand 0']
    #allocation3 [shape = 's32[2]{0}', space=sflag, size = 0x8, scoped, tag = 'scoped memory for tpu_custom_call.1']
    #allocation4 [shape = 's32[2]{0}', space=sflag, size = 0x8, scoped, tag = 'scoped memory for tpu_custom_call.1']
    #allocation5 [shape = 'u8[8192]{0}', space=vmem, size = 0x2000, scoped, tag = 'input window, operand 1']
    #allocation6 [shape = 's32[2]{0}', space=sflag, size = 0x8, scoped, tag = 'scoped memory for tpu_custom_call.1']
    #allocation7 [shape = 'u8[8192]{0}', space=vmem, size = 0x2000, scoped, tag = 'input window, operand 2']
    #allocation8 [shape = 'u8[32768]{0}', space=vmem, size = 0x8000, scoped, tag = 'input window, operand 3, single buffered']
    #allocation9 [shape = 's32[1]{0}', space=sflag, size = 0x4, scoped, tag = 'scoped memory for tpu_custom_call.1']
    #allocation10 [shape = 'u8[32768]{0}', space=vmem, size = 0x8000, scoped, tag = 'input window, operand 5, single buffered']
    #allocation11 [shape = 'u8[32768]{0}', space=vmem, size = 0x8000, scoped, tag = 'input window, operand 7, single buffered']
    #allocation12 [shape = 's32[1]{0}', space=sflag, size = 0x4, scoped, tag = 'scoped memory for tpu_custom_call.1']
    #allocation13 [shape = 'u8[32768]{0}', space=vmem, size = 0x8000, scoped, tag = 'input window, operand 9, single buffered']
    #allocation14 [shape = 'u8[16384]{0}', space=vmem, size = 0x4000, scoped, tag = 'output window, operand 0']
    %16 = vsyncpa [#allocation3], 0
    %s17 = scalar_lea.sflag [#allocation3], 1
    %18 = vsyncpa %s17, 0
    %19 = vsyncpa [#allocation6], 0
    %s20 = scalar_lea.sflag [#allocation6], 1
    %21 = vsyncpa %s20, 0
    %22 = vsyncpa [#allocation9], 0
    %23 = vsyncpa [#allocation12], 0
    %24 = vsyncpa [#allocation4], 0
    %s25 = scalar_lea.sflag [#allocation4], 1
    %26 = vsyncpa %s25, 0
    loop: start=0, step=1, limit=4
    $region2: #{tpu_custom_call.1} parent=1 // loop_pre_header
      _
    $region3: #{tpu_custom_call.1} parent=1 // loop_header
      %s28 = sphi 0, %s32
      %p29 = scmp.ge.s32.totalorder %s28, 4
      %s38 = sphi 0, %s40
      %s41 = sphi 0, %s38
      %s42 = sphi 0, %s41
      %s58 = sphi 0, %s42
      %s64 = sphi 0, %s66
      %s67 = sphi 0, %s64
      %s68 = sphi 0, %s67
      %s84 = sphi 0, %s68
      %s90 = sphi 0, %s92
      %s93 = sphi 0, %s90
      %s94 = sphi 0, %s93
      %s110 = sphi 0, %s94
      %s114 = sphi 0, %s114
      %s116 = sphi 0, %s114
      %s117 = sphi 0, %s116
      %s131 = sphi 0, %s117
      %s135 = sphi 0, %s135
      %s137 = sphi 0, %s135
      %s138 = sphi 0, %s137
      %s152 = sphi 0, %s138
      %s156 = sphi 0, %s156
      %s158 = sphi 0, %s156
      %s159 = sphi 0, %s158
      %s173 = sphi 0, %s159
      %s177 = sphi 0, %s177
      %s179 = sphi 0, %s177
      %s180 = sphi 0, %s179
      %s194 = sphi 0, %s180
      %s198 = sphi 0, %s198
      %s200 = sphi 0, %s198
      %s201 = sphi 0, %s200
      %s215 = sphi 0, %s201
      %s219 = sphi 0, %s219
      %s221 = sphi 0, %s219
      %s222 = sphi 0, %s221
      %s236 = sphi 0, %s222
      %s240 = sphi 0, %s240
      %s242 = sphi 0, %s240
      %s243 = sphi 0, %s242
      %s257 = sphi 0, %s243
      %s261 = sphi 0, %s261
      %s263 = sphi 0, %s261
      %s264 = sphi 0, %s263
      %s278 = sphi 0, %s264
      %s284 = sphi 0, %s286
      %s287 = sphi 0, %s284
      %s288 = sphi 0, %s287
      %s304 = sphi 0, %s288
    $region4: #{tpu_custom_call.1} parent=1 // loop_header_branch
      %31 = sbr.rel (%p29) target = $region8
    $region5: #{tpu_custom_call.1} parent=1 // loop_body
      %s33 = ssub.s32 %s28, 1
      %s34 = ssub.s32 %s28, 2
      %s35 = sadd.s32 %s28, 1
      %s36 = ssub.s32 %s28, %s35
      %p37 = scmp.eq.s32.totalorder %s36, 0
      %s39 = sadd.s32 %s38, 1
      %s40 = scalar_select %p37, %s38, %s39
      %p43 = pneg %p37
      %p44 = scmp.eq.s32.totalorder %s28, 1
      %p45 = por %p43, %p44
      %p46 = scmp.ne.s32.totalorder %s38, %s41
      %p47 = scmp.eq.s32.totalorder %s28, 0
      %p48 = por %p46, %p47
      %p49 = scmp.ne.s32.totalorder %s38, %s41
      %p50 = scmp.eq.s32.totalorder %s33, 1
      %p51 = por %p49, %p50
      %p52 = scmp.ne.s32.totalorder %s41, %s42
      %p53 = scmp.eq.s32.totalorder %s33, 0
      %p54 = por %p52, %p53
      %p55 = scmp.ne.s32.totalorder %s41, %s42
      %p56 = scmp.eq.s32.totalorder %s34, 1
      %p57 = por %p55, %p56
      %p59 = scmp.ne.s32.totalorder %s42, %s58
      %p60 = scmp.eq.s32.totalorder %s34, 0
      %p61 = por %p59, %p60
      %s62 = ssub.s32 %s28, %s35
      %p63 = scmp.eq.s32.totalorder %s62, 0
      %s65 = sadd.s32 %s64, 1
      %s66 = scalar_select %p63, %s64, %s65
      %p69 = pneg %p63
      %p70 = scmp.eq.s32.totalorder %s28, 1
      %p71 = por %p69, %p70
      %p72 = scmp.ne.s32.totalorder %s64, %s67
      %p73 = scmp.eq.s32.totalorder %s28, 0
      %p74 = por %p72, %p73
      %p75 = scmp.ne.s32.totalorder %s64, %s67
      %p76 = scmp.eq.s32.totalorder %s33, 1
      %p77 = por %p75, %p76
      %p78 = scmp.ne.s32.totalorder %s67, %s68
      %p79 = scmp.eq.s32.totalorder %s33, 0
      %p80 = por %p78, %p79
      %p81 = scmp.ne.s32.totalorder %s67, %s68
      %p82 = scmp.eq.s32.totalorder %s34, 1
      %p83 = por %p81, %p82
      %p85 = scmp.ne.s32.totalorder %s68, %s84
      %p86 = scmp.eq.s32.totalorder %s34, 0
      %p87 = por %p85, %p86
      %s88 = ssub.s32 %s28, %s35
      %p89 = scmp.eq.s32.totalorder %s88, 0
      %s91 = sadd.s32 %s90, 1
      %s92 = scalar_select %p89, %s90, %s91
      %p95 = pneg %p89
      %p96 = scmp.eq.s32.totalorder %s28, 1
      %p97 = por %p95, %p96
      %p98 = scmp.ne.s32.totalorder %s90, %s93
      %p99 = scmp.eq.s32.totalorder %s28, 0
      %p100 = por %p98, %p99
      %p101 = scmp.ne.s32.totalorder %s90, %s93
      %p102 = scmp.eq.s32.totalorder %s33, 1
      %p103 = por %p101, %p102
      %p104 = scmp.ne.s32.totalorder %s93, %s94
      %p105 = scmp.eq.s32.totalorder %s33, 0
      %p106 = por %p104, %p105
      %p107 = scmp.ne.s32.totalorder %s93, %s94
      %p108 = scmp.eq.s32.totalorder %s34, 1
      %p109 = por %p107, %p108
      %p111 = scmp.ne.s32.totalorder %s94, %s110
      %p112 = scmp.eq.s32.totalorder %s34, 0
      %p113 = por %p111, %p112
      %s115 = sadd.s32 %s114, 1
      %p118 = scmp.eq.s32.totalorder %s28, 1
      %p119 = scmp.ne.s32.totalorder %s114, %s116
      %p120 = scmp.eq.s32.totalorder %s28, 0
      %p121 = por %p119, %p120
      %p122 = scmp.ne.s32.totalorder %s114, %s116
      %p123 = scmp.eq.s32.totalorder %s33, 1
      %p124 = por %p122, %p123
      %p125 = scmp.ne.s32.totalorder %s116, %s117
      %p126 = scmp.eq.s32.totalorder %s33, 0
      %p127 = por %p125, %p126
      %p128 = scmp.ne.s32.totalorder %s116, %s117
      %p129 = scmp.eq.s32.totalorder %s34, 1
      %p130 = por %p128, %p129
      %p132 = scmp.ne.s32.totalorder %s117, %s131
      %p133 = scmp.eq.s32.totalorder %s34, 0
      %p134 = por %p132, %p133
      %s136 = sadd.s32 %s135, 1
      %p139 = scmp.eq.s32.totalorder %s28, 1
      %p140 = scmp.ne.s32.totalorder %s135, %s137
      %p141 = scmp.eq.s32.totalorder %s28, 0
      %p142 = por %p140, %p141
      %p143 = scmp.ne.s32.totalorder %s135, %s137
      %p144 = scmp.eq.s32.totalorder %s33, 1
      %p145 = por %p143, %p144
      %p146 = scmp.ne.s32.totalorder %s137, %s138
      %p147 = scmp.eq.s32.totalorder %s33, 0
      %p148 = por %p146, %p147
      %p149 = scmp.ne.s32.totalorder %s137, %s138
      %p150 = scmp.eq.s32.totalorder %s34, 1
      %p151 = por %p149, %p150
      %p153 = scmp.ne.s32.totalorder %s138, %s152
      %p154 = scmp.eq.s32.totalorder %s34, 0
      %p155 = por %p153, %p154
      %s157 = sadd.s32 %s156, 1
      %p160 = scmp.eq.s32.totalorder %s28, 1
      %p161 = scmp.ne.s32.totalorder %s156, %s158
      %p162 = scmp.eq.s32.totalorder %s28, 0
      %p163 = por %p161, %p162
      %p164 = scmp.ne.s32.totalorder %s156, %s158
      %p165 = scmp.eq.s32.totalorder %s33, 1
      %p166 = por %p164, %p165
      %p167 = scmp.ne.s32.totalorder %s158, %s159
      %p168 = scmp.eq.s32.totalorder %s33, 0
      %p169 = por %p167, %p168
      %p170 = scmp.ne.s32.totalorder %s158, %s159
      %p171 = scmp.eq.s32.totalorder %s34, 1
      %p172 = por %p170, %p171
      %p174 = scmp.ne.s32.totalorder %s159, %s173
      %p175 = scmp.eq.s32.totalorder %s34, 0
      %p176 = por %p174, %p175
      %s178 = sadd.s32 %s177, 1
      %p181 = scmp.eq.s32.totalorder %s28, 1
      %p182 = scmp.ne.s32.totalorder %s177, %s179
      %p183 = scmp.eq.s32.totalorder %s28, 0
      %p184 = por %p182, %p183
      %p185 = scmp.ne.s32.totalorder %s177, %s179
      %p186 = scmp.eq.s32.totalorder %s33, 1
      %p187 = por %p185, %p186
      %p188 = scmp.ne.s32.totalorder %s179, %s180
      %p189 = scmp.eq.s32.totalorder %s33, 0
      %p190 = por %p188, %p189
      %p191 = scmp.ne.s32.totalorder %s179, %s180
      %p192 = scmp.eq.s32.totalorder %s34, 1
      %p193 = por %p191, %p192
      %p195 = scmp.ne.s32.totalorder %s180, %s194
      %p196 = scmp.eq.s32.totalorder %s34, 0
      %p197 = por %p195, %p196
      %s199 = sadd.s32 %s198, 1
      %p202 = scmp.eq.s32.totalorder %s28, 1
      %p203 = scmp.ne.s32.totalorder %s198, %s200
      %p204 = scmp.eq.s32.totalorder %s28, 0
      %p205 = por %p203, %p204
      %p206 = scmp.ne.s32.totalorder %s198, %s200
      %p207 = scmp.eq.s32.totalorder %s33, 1
      %p208 = por %p206, %p207
      %p209 = scmp.ne.s32.totalorder %s200, %s201
      %p210 = scmp.eq.s32.totalorder %s33, 0
      %p211 = por %p209, %p210
      %p212 = scmp.ne.s32.totalorder %s200, %s201
      %p213 = scmp.eq.s32.totalorder %s34, 1
      %p214 = por %p212, %p213
      %p216 = scmp.ne.s32.totalorder %s201, %s215
      %p217 = scmp.eq.s32.totalorder %s34, 0
      %p218 = por %p216, %p217
      %s220 = sadd.s32 %s219, 1
      %p223 = scmp.eq.s32.totalorder %s28, 1
      %p224 = scmp.ne.s32.totalorder %s219, %s221
      %p225 = scmp.eq.s32.totalorder %s28, 0
      %p226 = por %p224, %p225
      %p227 = scmp.ne.s32.totalorder %s219, %s221
      %p228 = scmp.eq.s32.totalorder %s33, 1
      %p229 = por %p227, %p228
      %p230 = scmp.ne.s32.totalorder %s221, %s222
      %p231 = scmp.eq.s32.totalorder %s33, 0
      %p232 = por %p230, %p231
      %p233 = scmp.ne.s32.totalorder %s221, %s222
      %p234 = scmp.eq.s32.totalorder %s34, 1
      %p235 = por %p233, %p234
      %p237 = scmp.ne.s32.totalorder %s222, %s236
      %p238 = scmp.eq.s32.totalorder %s34, 0
      %p239 = por %p237, %p238
      %s241 = sadd.s32 %s240, 1
      %p244 = scmp.eq.s32.totalorder %s28, 1
      %p245 = scmp.ne.s32.totalorder %s240, %s242
      %p246 = scmp.eq.s32.totalorder %s28, 0
      %p247 = por %p245, %p246
      %p248 = scmp.ne.s32.totalorder %s240, %s242
      %p249 = scmp.eq.s32.totalorder %s33, 1
      %p250 = por %p248, %p249
      %p251 = scmp.ne.s32.totalorder %s242, %s243
      %p252 = scmp.eq.s32.totalorder %s33, 0
      %p253 = por %p251, %p252
      %p254 = scmp.ne.s32.totalorder %s242, %s243
      %p255 = scmp.eq.s32.totalorder %s34, 1
      %p256 = por %p254, %p255
      %p258 = scmp.ne.s32.totalorder %s243, %s257
      %p259 = scmp.eq.s32.totalorder %s34, 0
      %p260 = por %p258, %p259
      %s262 = sadd.s32 %s261, 1
      %p265 = scmp.eq.s32.totalorder %s28, 1
      %p266 = scmp.ne.s32.totalorder %s261, %s263
      %p267 = scmp.eq.s32.totalorder %s28, 0
      %p268 = por %p266, %p267
      %p269 = scmp.ne.s32.totalorder %s261, %s263
      %p270 = scmp.eq.s32.totalorder %s33, 1
      %p271 = por %p269, %p270
      %p272 = scmp.ne.s32.totalorder %s263, %s264
      %p273 = scmp.eq.s32.totalorder %s33, 0
      %p274 = por %p272, %p273
      %p275 = scmp.ne.s32.totalorder %s263, %s264
      %p276 = scmp.eq.s32.totalorder %s34, 1
      %p277 = por %p275, %p276
      %p279 = scmp.ne.s32.totalorder %s264, %s278
      %p280 = scmp.eq.s32.totalorder %s34, 0
      %p281 = por %p279, %p280
      %s282 = ssub.s32 %s28, %s35
      %p283 = scmp.eq.s32.totalorder %s282, 0
      %s285 = sadd.s32 %s284, 1
      %s286 = scalar_select %p283, %s284, %s285
      %p289 = pneg %p283
      %p290 = scmp.eq.s32.totalorder %s28, 1
      %p291 = por %p289, %p290
      %p292 = scmp.ne.s32.totalorder %s284, %s287
      %p293 = scmp.eq.s32.totalorder %s28, 0
      %p294 = por %p292, %p293
      %p295 = scmp.ne.s32.totalorder %s284, %s287
      %p296 = scmp.eq.s32.totalorder %s33, 1
      %p297 = por %p295, %p296
      %p298 = scmp.ne.s32.totalorder %s287, %s288
      %p299 = scmp.eq.s32.totalorder %s33, 0
      %p300 = por %p298, %p299
      %p301 = scmp.ne.s32.totalorder %s287, %s288
      %p302 = scmp.eq.s32.totalorder %s34, 1
      %p303 = por %p301, %p302
      %p305 = scmp.ne.s32.totalorder %s288, %s304
      %p306 = scmp.eq.s32.totalorder %s34, 0
      %p307 = por %p305, %p306
      %p308 = scmp.le.s32.totalorder 1, %s28
      %p309 = scmp.lt.s32.totalorder %s28, 3
      %p310 = pnand %p308, %p309
      %p311 = pneg %p310
      // Predicated region
      $region9: #{tpu_custom_call.1} parent=5 // pred_check
        _
      $region10: #{tpu_custom_call.1} parent=5 // pred_check_branch
        %313 = sbr.rel (%p310) target = $region12
      $region11: #{tpu_custom_call.1} parent=5 // pred_region
        %s314 = ssub.s32 %s28, 1
        // Predicated region
        $region13: #{tpu_custom_call.1} parent=11 // pred_check
          %p315 = pneg %p127
        $region14: #{tpu_custom_call.1} parent=11 // pred_check_branch
          %317 = sbr.rel (%p315) target = $region16
        $region15: #{tpu_custom_call.1} parent=11 // pred_region
          %s319 = ssub.s32 1024, 1024
          %320 = vsyncadd [#allocation9], %s319
          %s321 = sshll.u32 [#allocation8], 4
          %s322 = int_to_ptr.vmem [resolvable:$true] %s321
          %327 = dma.hbm_to_vmem [thread:$0]  %s3, 1024, %s322, [#allocation9], 64, 64, 4
        $region16: #{tpu_custom_call.1} parent=11 // pred_fallthru
          _
        // Predicated region
        $region17: #{tpu_custom_call.1} parent=11 // pred_check
          %p328 = pneg %p148
        $region18: #{tpu_custom_call.1} parent=11 // pred_check_branch
          %330 = sbr.rel (%p328) target = $region20
        $region19: #{tpu_custom_call.1} parent=11 // pred_region
          _
        $region20: #{tpu_custom_call.1} parent=11 // pred_fallthru
          _
        // Predicated region
        $region21: #{tpu_custom_call.1} parent=11 // pred_check
          %p331 = pneg %p169
        $region22: #{tpu_custom_call.1} parent=11 // pred_check_branch
          %333 = sbr.rel (%p331) target = $region24
        $region23: #{tpu_custom_call.1} parent=11 // pred_region
          %s335 = ssub.s32 1024, 1024
          %336 = vsyncadd [#allocation9], %s335
          %s337 = sshll.u32 [#allocation10], 4
          %s338 = int_to_ptr.vmem [resolvable:$true] %s337
          %343 = dma.hbm_to_vmem [thread:$0]  %s5, 1024, %s338, [#allocation9], 64, 64, 4
        $region24: #{tpu_custom_call.1} parent=11 // pred_fallthru
          _
        // Predicated region
        $region25: #{tpu_custom_call.1} parent=11 // pred_check
          %p344 = pneg %p190
        $region26: #{tpu_custom_call.1} parent=11 // pred_check_branch
          %346 = sbr.rel (%p344) target = $region28
        $region27: #{tpu_custom_call.1} parent=11 // pred_region
          _
        $region28: #{tpu_custom_call.1} parent=11 // pred_fallthru
          _
        // Predicated region
        $region29: #{tpu_custom_call.1} parent=11 // pred_check
          %p347 = pneg %p211
        $region30: #{tpu_custom_call.1} parent=11 // pred_check_branch
          %349 = sbr.rel (%p347) target = $region32
        $region31: #{tpu_custom_call.1} parent=11 // pred_region
          %s351 = ssub.s32 1024, 1024
          %352 = vsyncadd [#allocation12], %s351
          %s353 = sshll.u32 [#allocation11], 4
          %s354 = int_to_ptr.vmem [resolvable:$true] %s353
          %359 = dma.hbm_to_vmem [thread:$0]  %s7, 1024, %s354, [#allocation12], 64, 64, 4
        $region32: #{tpu_custom_call.1} parent=11 // pred_fallthru
          _
        // Predicated region
        $region33: #{tpu_custom_call.1} parent=11 // pred_check
          %p360 = pneg %p232
        $region34: #{tpu_custom_call.1} parent=11 // pred_check_branch
          %362 = sbr.rel (%p360) target = $region36
        $region35: #{tpu_custom_call.1} parent=11 // pred_region
          _
        $region36: #{tpu_custom_call.1} parent=11 // pred_fallthru
          _
        // Predicated region
        $region37: #{tpu_custom_call.1} parent=11 // pred_check
          %p363 = pneg %p253
        $region38: #{tpu_custom_call.1} parent=11 // pred_check_branch
          %365 = sbr.rel (%p363) target = $region40
        $region39: #{tpu_custom_call.1} parent=11 // pred_region
          %s367 = ssub.s32 1024, 1024
          %368 = vsyncadd [#allocation12], %s367
          %s369 = sshll.u32 [#allocation13], 4
          %s370 = int_to_ptr.vmem [resolvable:$true] %s369
          %375 = dma.hbm_to_vmem [thread:$0]  %s9, 1024, %s370, [#allocation12], 64, 64, 4
        $region40: #{tpu_custom_call.1} parent=11 // pred_fallthru
          _
        // Predicated region
        $region41: #{tpu_custom_call.1} parent=11 // pred_check
          %p376 = pneg %p274
        $region42: #{tpu_custom_call.1} parent=11 // pred_check_branch
          %378 = sbr.rel (%p376) target = $region44
        $region43: #{tpu_custom_call.1} parent=11 // pred_region
          _
        $region44: #{tpu_custom_call.1} parent=11 // pred_fallthru
          _
      $region12: #{tpu_custom_call.1} parent=5 // pred_fallthru
        _
      %p379 = scmp.lt.s32.totalorder %s28, 2
      // Predicated region
      $region45: #{tpu_custom_call.1} parent=5 // pred_check
        %p380 = pneg %p379
      $region46: #{tpu_custom_call.1} parent=5 // pred_check_branch
        %382 = sbr.rel (%p380) target = $region48
      $region47: #{tpu_custom_call.1} parent=5 // pred_region
        // Predicated region
        $region49: #{tpu_custom_call.1} parent=47 // pred_check
          %p383 = pneg %p48
        $region50: #{tpu_custom_call.1} parent=47 // pred_check_branch
          %385 = sbr.rel (%p383) target = $region52
        $region51: #{tpu_custom_call.1} parent=47 // pred_region
          %s386 = sand.u32 %s38, 1
          %s387 = scalar_lea.sflag [#allocation3], %s386
          %s388 = sand.u32 %s38, 1
          %s389 = smul.addr %s388, 8
          %s390 = scalar_lea.vmem [#allocation2], %s389
          %s392 = ssub.s32 128, 128
          %393 = vsyncadd %s387, %s392
          %s394 = smul.addr %s28, 2
          %s395 = smul.addr %s394, 64
          %s396 = scalar_lea.hbm %s0, %s395
          %s397 = sshll.u32 %s390, 4
          %s398 = int_to_ptr.vmem [resolvable:$true] %s397
          %403 = dma.hbm_to_vmem [thread:$0]  %s396, 128, %s398, %s387, 64, 64, 4
        $region52: #{tpu_custom_call.1} parent=47 // pred_fallthru
          _
        // Predicated region
        $region53: #{tpu_custom_call.1} parent=47 // pred_check
          %p404 = pneg %p74
        $region54: #{tpu_custom_call.1} parent=47 // pred_check_branch
          %406 = sbr.rel (%p404) target = $region56
        $region55: #{tpu_custom_call.1} parent=47 // pred_region
          %s407 = sand.u32 %s28, 1
          %s408 = scalar_lea.sflag [#allocation6], %s407
          %s409 = sand.u32 %s64, 1
          %s410 = smul.addr %s409, 8
          %s411 = scalar_lea.vmem [#allocation5], %s410
          %s413 = ssub.s32 128, 128
          %414 = vsyncadd %s408, %s413
          %s415 = smul.addr %s28, 2
          %s416 = smul.addr %s415, 64
          %s417 = scalar_lea.hbm %s1, %s416
          %s418 = sshll.u32 %s411, 4
          %s419 = int_to_ptr.vmem [resolvable:$true] %s418
          %424 = dma.hbm_to_vmem [thread:$0]  %s417, 128, %s419, %s408, 64, 64, 4
        $region56: #{tpu_custom_call.1} parent=47 // pred_fallthru
          _
        // Predicated region
        $region57: #{tpu_custom_call.1} parent=47 // pred_check
          %p425 = pneg %p100
        $region58: #{tpu_custom_call.1} parent=47 // pred_check_branch
          %427 = sbr.rel (%p425) target = $region60
        $region59: #{tpu_custom_call.1} parent=47 // pred_region
          %s428 = sand.u32 %s28, 1
          %s429 = scalar_lea.sflag [#allocation6], %s428
          %s430 = sand.u32 %s90, 1
          %s431 = smul.addr %s430, 8
          %s432 = scalar_lea.vmem [#allocation7], %s431
          %s434 = ssub.s32 128, 128
          %435 = vsyncadd %s429, %s434
          %s436 = smul.addr %s28, 2
          %s437 = smul.addr %s436, 64
          %s438 = scalar_lea.hbm %s2, %s437
          %s439 = sshll.u32 %s432, 4
          %s440 = int_to_ptr.vmem [resolvable:$true] %s439
          %445 = dma.hbm_to_vmem [thread:$0]  %s438, 128, %s440, %s429, 64, 64, 4
        $region60: #{tpu_custom_call.1} parent=47 // pred_fallthru
          _
      $region48: #{tpu_custom_call.1} parent=5 // pred_fallthru
        _
      %p446 = scmp.le.s32.totalorder 1, %s28
      %p447 = scmp.lt.s32.totalorder %s28, 3
      %p448 = pnand %p446, %p447
      %p449 = pneg %p448
      // Predicated region
      $region61: #{tpu_custom_call.1} parent=5 // pred_check
        _
      $region62: #{tpu_custom_call.1} parent=5 // pred_check_branch
        %451 = sbr.rel (%p448) target = $region64
      $region63: #{tpu_custom_call.1} parent=5 // pred_region
        %s452 = ssub.s32 %s28, 1
        %s453 = sand.u32 %s41, 1
        %s454 = scalar_lea.sflag [#allocation3], %s453
        %s455 = sand.u32 %s41, 1
        %s456 = smul.addr %s455, 8
        %s457 = scalar_lea.vmem [#allocation2], %s456
        // Predicated region
        $region65: #{tpu_custom_call.1} parent=63 // pred_check
          %p458 = pneg %p54
        $region66: #{tpu_custom_call.1} parent=63 // pred_check_branch
          %460 = sbr.rel (%p458) target = $region68
        $region67: #{tpu_custom_call.1} parent=63 // pred_region
          %461 = dma.done %s454, 128
        $region68: #{tpu_custom_call.1} parent=63 // pred_fallthru
          _
        %s462 = sand.u32 %s33, 1
        %s463 = scalar_lea.sflag [#allocation6], %s462
        %s464 = sand.u32 %s67, 1
        %s465 = smul.addr %s464, 8
        %s466 = scalar_lea.vmem [#allocation5], %s465
        // Predicated region
        $region69: #{tpu_custom_call.1} parent=63 // pred_check
          %p467 = pneg %p80
        $region70: #{tpu_custom_call.1} parent=63 // pred_check_branch
          %469 = sbr.rel (%p467) target = $region72
        $region71: #{tpu_custom_call.1} parent=63 // pred_region
          %470 = dma.done %s463, 128
        $region72: #{tpu_custom_call.1} parent=63 // pred_fallthru
          _
        %s471 = sand.u32 %s33, 1
        %s472 = scalar_lea.sflag [#allocation6], %s471
        %s473 = sand.u32 %s93, 1
        %s474 = smul.addr %s473, 8
        %s475 = scalar_lea.vmem [#allocation7], %s474
        // Predicated region
        $region73: #{tpu_custom_call.1} parent=63 // pred_check
          %p476 = pneg %p106
        $region74: #{tpu_custom_call.1} parent=63 // pred_check_branch
          %478 = sbr.rel (%p476) target = $region76
        $region75: #{tpu_custom_call.1} parent=63 // pred_region
          %479 = dma.done %s472, 128
        $region76: #{tpu_custom_call.1} parent=63 // pred_fallthru
          _
        // Predicated region
        $region77: #{tpu_custom_call.1} parent=63 // pred_check
          %p480 = pneg %p127
        $region78: #{tpu_custom_call.1} parent=63 // pred_check_branch
          %482 = sbr.rel (%p480) target = $region80
        $region79: #{tpu_custom_call.1} parent=63 // pred_region
          %483 = dma.done [#allocation9], 1024
        $region80: #{tpu_custom_call.1} parent=63 // pred_fallthru
          _
        // Predicated region
        $region81: #{tpu_custom_call.1} parent=63 // pred_check
          %p484 = pneg %p169
        $region82: #{tpu_custom_call.1} parent=63 // pred_check_branch
          %486 = sbr.rel (%p484) target = $region84
        $region83: #{tpu_custom_call.1} parent=63 // pred_region
          %487 = dma.done [#allocation9], 1024
        $region84: #{tpu_custom_call.1} parent=63 // pred_fallthru
          _
        // Predicated region
        $region85: #{tpu_custom_call.1} parent=63 // pred_check
          %p488 = pneg %p211
        $region86: #{tpu_custom_call.1} parent=63 // pred_check_branch
          %490 = sbr.rel (%p488) target = $region88
        $region87: #{tpu_custom_call.1} parent=63 // pred_region
          %491 = dma.done [#allocation12], 1024
        $region88: #{tpu_custom_call.1} parent=63 // pred_fallthru
          _
        // Predicated region
        $region89: #{tpu_custom_call.1} parent=63 // pred_check
          %p492 = pneg %p253
        $region90: #{tpu_custom_call.1} parent=63 // pred_check_branch
          %494 = sbr.rel (%p492) target = $region92
        $region91: #{tpu_custom_call.1} parent=63 // pred_region
          %495 = dma.done [#allocation12], 1024
        $region92: #{tpu_custom_call.1} parent=63 // pred_fallthru
          _
        %s496 = sand.u32 %s41, 1
        %s497 = scalar_lea.sflag [#allocation3], %s496
        %s498 = sand.u32 %s41, 1
        %s499 = smul.addr %s498, 8
        %s500 = scalar_lea.vmem [#allocation2], %s499
        %p501 = pneg %p54
        %p502 = pneg %p51
        %s503 = sand.u32 %s33, 1
        %s504 = scalar_lea.sflag [#allocation6], %s503
        %s505 = sand.u32 %s67, 1
        %s506 = smul.addr %s505, 8
        %s507 = scalar_lea.vmem [#allocation5], %s506
        %p508 = pneg %p80
        %p509 = pneg %p77
        %s510 = sand.u32 %s33, 1
        %s511 = scalar_lea.sflag [#allocation6], %s510
        %s512 = sand.u32 %s93, 1
        %s513 = smul.addr %s512, 8
        %s514 = scalar_lea.vmem [#allocation7], %s513
        %p515 = pneg %p106
        %p516 = pneg %p103
        %p517 = pneg %p127
        %p518 = pneg %p124
        %p519 = pneg %p148
        %p520 = pneg %p145
        %p521 = pneg %p169
        %p522 = pneg %p166
        %p523 = pneg %p190
        %p524 = pneg %p187
        %p525 = pneg %p211
        %p526 = pneg %p208
        %p527 = pneg %p232
        %p528 = pneg %p229
        %p529 = pneg %p253
        %p530 = pneg %p250
        %p531 = pneg %p274
        %p532 = pneg %p271
        %p533 = pneg %p300
        %p534 = pneg %p297
        %s535 = sand.u32 %s287, 1
        %s536 = scalar_lea.sflag [#allocation4], %s535
        %s537 = sand.u32 %s287, 1
        %s538 = smul.addr %s537, 16
        %s539 = scalar_lea.vmem [#allocation14], %s538
        %v541 = vld [vmem:[%s457] sm:$0xf]
        %v542 = vld [vmem:[%s457 + $0x4] sm:$0xf]
        %v543 = vld [vmem:[%s466] sm:$0xf]
        %v544 = vld [vmem:[%s466 + $0x4] sm:$0xf]
        %v545 = vld [vmem:[%s475] sm:$0xf]
        %v546 = vld [vmem:[%s475 + $0x4] sm:$0xf]
        %v547 = vld [vmem:[#allocation8] sm:$0xf]
        %v548 = vld [vmem:[#allocation8 + $0x4] sm:$0xf]
        %v549 = vld [vmem:[#allocation8 + $0x8] sm:$0xf]
        %v550 = vld [vmem:[#allocation8 + $0xc] sm:$0xf]
        %v551 = vld [vmem:[#allocation8 + $0x10] sm:$0xf]
        %v552 = vld [vmem:[#allocation8 + $0x14] sm:$0xf]
        %v553 = vld [vmem:[#allocation8 + $0x18] sm:$0xf]
        %v554 = vld [vmem:[#allocation8 + $0x1c] sm:$0xf]
        %v555 = vld [vmem:[#allocation8 + $0x20] sm:$0xf]
        %v556 = vld [vmem:[#allocation8 + $0x24] sm:$0xf]
        %v557 = vld [vmem:[#allocation8 + $0x28] sm:$0xf]
        %v558 = vld [vmem:[#allocation8 + $0x2c] sm:$0xf]
        %v559 = vld [vmem:[#allocation8 + $0x30] sm:$0xf]
        %v560 = vld [vmem:[#allocation8 + $0x34] sm:$0xf]
        %v561 = vld [vmem:[#allocation8 + $0x38] sm:$0xf]
        %v562 = vld [vmem:[#allocation8 + $0x3c] sm:$0xf]
        %v563 = vld [vmem:[%s4] sm:$0x1]
        %v565 = vlaneseq
        %v566 = vshrl.u32 %v565, 7
        %v567 = vsub.s32 0, %v566
        %v568 = vrot.slane %v563, %v567
        %v572 = vunpack.c.l.b16 %v541
        %v573 = vunpack.c.l.b16 %v542
        %v574 = vpack.c.b16 %v573, %v572
        %v592 = vunpack.c.l.b16 %v547
        %v593 = vunpack.c.l.b16 %v548
        %v594 = vunpack.c.l.b16 %v549
        %v595 = vunpack.c.l.b16 %v550
        %v596 = vunpack.c.l.b16 %v551
        %v597 = vunpack.c.l.b16 %v552
        %v598 = vunpack.c.l.b16 %v553
        %v599 = vunpack.c.l.b16 %v554
        %v600 = vunpack.c.l.b16 %v555
        %v601 = vunpack.c.l.b16 %v556
        %v602 = vunpack.c.l.b16 %v557
        %v603 = vunpack.c.l.b16 %v558
        %v604 = vunpack.c.l.b16 %v559
        %v605 = vunpack.c.l.b16 %v560
        %v606 = vunpack.c.l.b16 %v561
        %v607 = vunpack.c.l.b16 %v562
        %v608 = vpack.c.b16 %v593, %v592
        %v609 = vpack.c.b16 %v595, %v594
        %v610 = vpack.c.b16 %v597, %v596
        %v611 = vpack.c.b16 %v599, %v598
        %v612 = vpack.c.b16 %v601, %v600
        %v613 = vpack.c.b16 %v603, %v602
        %v614 = vpack.c.b16 %v605, %v604
        %v615 = vpack.c.b16 %v607, %v606
        %624 = vmatprep.subr.bf16.mxu0 0
        %625 = vmatpush1.bf16.msra.mxu0 %v608
        %626 = vmatprep.subr.bf16.mxu0 0
        %627 = vmatpush1.bf16.msra.mxu0 %v609
        %628 = vmatprep.subr.bf16.mxu0 0
        %629 = vmatpush1.bf16.msra.mxu0 %v610
        %630 = vmatprep.subr.bf16.mxu0 0
        %631 = vmatpush1.bf16.msra.mxu0 %v611
        %632 = vmatprep.subr.bf16.mxu0 0
        %633 = vmatpush1.bf16.msra.mxu0 %v612
        %634 = vmatprep.subr.bf16.mxu0 0
        %635 = vmatpush1.bf16.msra.mxu0 %v613
        %636 = vmatprep.subr.bf16.mxu0 0
        %637 = vmatpush1.bf16.msra.mxu0 %v614
        %638 = vmatprep.subr.bf16.mxu0 0
        %639 = vmatpush1.bf16.msra.mxu0 %v615
        %640 = vmatprep.subr.bf16.mxu0 0
        %641 = vmatpush1.bf16.msra.mxu0 0
        %642 = vmatprep.subr.bf16.mxu0 0
        %643 = vmatpush1.bf16.msra.mxu0 0
        %644 = vmatprep.subr.bf16.mxu0 0
        %645 = vmatpush1.bf16.msra.mxu0 0
        %646 = vmatprep.subr.bf16.mxu0 0
        %647 = vmatpush1.bf16.msra.mxu0 0
        %648 = vmatprep.subr.bf16.mxu0 0
        %649 = vmatpush1.bf16.msra.mxu0 0
        %650 = vmatprep.subr.bf16.mxu0 0
        %651 = vmatpush1.bf16.msra.mxu0 0
        %652 = vmatprep.subr.bf16.mxu0 0
        %653 = vmatpush1.bf16.msra.mxu0 0
        %654 = vmatprep.subr.bf16.mxu0 0
        %655 = vmatpush1.bf16.msra.mxu0 0
        %656 = vmatprep.mubr.bf16.mxu0 0
        %657 = vmatmul.mubr.bf16.gmra.mrb[0].mxu0 %v574
        %v658 = vpop.f32.mrb[0].mxu0
        %v659 = vadd.f32 %v568, %v658
        %v660 = vpop.f32.mrb[0].mxu0
        %v661 = vpop.f32.mrb[0].mxu0
        %v662 = vadd.f32 %v568, %v661
        %v663 = vpop.f32.mrb[0].mxu0
        %664 = vdwg.mxu0
        %v665 = vld [vmem:[#allocation10] sm:$0xf]
        %v666 = vld [vmem:[#allocation10 + $0x4] sm:$0xf]
        %v667 = vld [vmem:[#allocation10 + $0x8] sm:$0xf]
        %v668 = vld [vmem:[#allocation10 + $0xc] sm:$0xf]
        %v669 = vld [vmem:[#allocation10 + $0x10] sm:$0xf]
        %v670 = vld [vmem:[#allocation10 + $0x14] sm:$0xf]
        %v671 = vld [vmem:[#allocation10 + $0x18] sm:$0xf]
        %v672 = vld [vmem:[#allocation10 + $0x1c] sm:$0xf]
        %v673 = vld [vmem:[#allocation10 + $0x20] sm:$0xf]
        %v674 = vld [vmem:[#allocation10 + $0x24] sm:$0xf]
        %v675 = vld [vmem:[#allocation10 + $0x28] sm:$0xf]
        %v676 = vld [vmem:[#allocation10 + $0x2c] sm:$0xf]
        %v677 = vld [vmem:[#allocation10 + $0x30] sm:$0xf]
        %v678 = vld [vmem:[#allocation10 + $0x34] sm:$0xf]
        %v679 = vld [vmem:[#allocation10 + $0x38] sm:$0xf]
        %v680 = vld [vmem:[#allocation10 + $0x3c] sm:$0xf]
        %v681 = vld [vmem:[%s6] sm:$0x1]
        %v683 = vlaneseq
        %v684 = vshrl.u32 %v683, 7
        %v685 = vsub.s32 0, %v684
        %v686 = vrot.slane %v681, %v685
        %v690 = vunpack.c.l.b16 %v543
        %v691 = vunpack.c.l.b16 %v544
        %v692 = vpack.c.b16 %v691, %v690
        %v710 = vunpack.c.l.b16 %v665
        %v711 = vunpack.c.l.b16 %v666
        %v712 = vunpack.c.l.b16 %v667
        %v713 = vunpack.c.l.b16 %v668
        %v714 = vunpack.c.l.b16 %v669
        %v715 = vunpack.c.l.b16 %v670
        %v716 = vunpack.c.l.b16 %v671
        %v717 = vunpack.c.l.b16 %v672
        %v718 = vunpack.c.l.b16 %v673
        %v719 = vunpack.c.l.b16 %v674
        %v720 = vunpack.c.l.b16 %v675
        %v721 = vunpack.c.l.b16 %v676
        %v722 = vunpack.c.l.b16 %v677
        %v723 = vunpack.c.l.b16 %v678
        %v724 = vunpack.c.l.b16 %v679
        %v725 = vunpack.c.l.b16 %v680
        %v726 = vpack.c.b16 %v711, %v710
        %v727 = vpack.c.b16 %v713, %v712
        %v728 = vpack.c.b16 %v715, %v714
        %v729 = vpack.c.b16 %v717, %v716
        %v730 = vpack.c.b16 %v719, %v718
        %v731 = vpack.c.b16 %v721, %v720
        %v732 = vpack.c.b16 %v723, %v722
        %v733 = vpack.c.b16 %v725, %v724
        %742 = vmatprep.subr.bf16.mxu0 0
        %743 = vmatpush1.bf16.msra.mxu0 %v726
        %744 = vmatprep.subr.bf16.mxu0 0
        %745 = vmatpush1.bf16.msra.mxu0 %v727
        %746 = vmatprep.subr.bf16.mxu0 0
        %747 = vmatpush1.bf16.msra.mxu0 %v728
        %748 = vmatprep.subr.bf16.mxu0 0
        %749 = vmatpush1.bf16.msra.mxu0 %v729
        %750 = vmatprep.subr.bf16.mxu0 0
        %751 = vmatpush1.bf16.msra.mxu0 %v730
        %752 = vmatprep.subr.bf16.mxu0 0
        %753 = vmatpush1.bf16.msra.mxu0 %v731
        %754 = vmatprep.subr.bf16.mxu0 0
        %755 = vmatpush1.bf16.msra.mxu0 %v732
        %756 = vmatprep.subr.bf16.mxu0 0
        %757 = vmatpush1.bf16.msra.mxu0 %v733
        %758 = vmatprep.subr.bf16.mxu0 0
        %759 = vmatpush1.bf16.msra.mxu0 0
        %760 = vmatprep.subr.bf16.mxu0 0
        %761 = vmatpush1.bf16.msra.mxu0 0
        %762 = vmatprep.subr.bf16.mxu0 0
        %763 = vmatpush1.bf16.msra.mxu0 0
        %764 = vmatprep.subr.bf16.mxu0 0
        %765 = vmatpush1.bf16.msra.mxu0 0
        %766 = vmatprep.subr.bf16.mxu0 0
        %767 = vmatpush1.bf16.msra.mxu0 0
        %768 = vmatprep.subr.bf16.mxu0 0
        %769 = vmatpush1.bf16.msra.mxu0 0
        %770 = vmatprep.subr.bf16.mxu0 0
        %771 = vmatpush1.bf16.msra.mxu0 0
        %772 = vmatprep.subr.bf16.mxu0 0
        %773 = vmatpush1.bf16.msra.mxu0 0
        %774 = vmatprep.mubr.bf16.mxu0 0
        %775 = vmatmul.mubr.bf16.gmra.mrb[0].mxu0 %v692
        %v776 = vpop.f32.mrb[0].mxu0
        %v777 = vadd.f32 %v686, %v776
        %v778 = vpop.f32.mrb[0].mxu0
        %v779 = vpop.f32.mrb[0].mxu0
        %v780 = vadd.f32 %v686, %v779
        %v781 = vpop.f32.mrb[0].mxu0
        %782 = vdwg.mxu0
        %v783 = vld [vmem:[#allocation11] sm:$0xf]
        %v784 = vld [vmem:[#allocation11 + $0x4] sm:$0xf]
        %v785 = vld [vmem:[#allocation11 + $0x8] sm:$0xf]
        %v786 = vld [vmem:[#allocation11 + $0xc] sm:$0xf]
        %v787 = vld [vmem:[#allocation11 + $0x10] sm:$0xf]
        %v788 = vld [vmem:[#allocation11 + $0x14] sm:$0xf]
        %v789 = vld [vmem:[#allocation11 + $0x18] sm:$0xf]
        %v790 = vld [vmem:[#allocation11 + $0x1c] sm:$0xf]
        %v791 = vld [vmem:[#allocation11 + $0x20] sm:$0xf]
        %v792 = vld [vmem:[#allocation11 + $0x24] sm:$0xf]
        %v793 = vld [vmem:[#allocation11 + $0x28] sm:$0xf]
        %v794 = vld [vmem:[#allocation11 + $0x2c] sm:$0xf]
        %v795 = vld [vmem:[#allocation11 + $0x30] sm:$0xf]
        %v796 = vld [vmem:[#allocation11 + $0x34] sm:$0xf]
        %v797 = vld [vmem:[#allocation11 + $0x38] sm:$0xf]
        %v798 = vld [vmem:[#allocation11 + $0x3c] sm:$0xf]
        %v799 = vld [vmem:[%s8] sm:$0x1]
        %v801 = vlaneseq
        %v802 = vshrl.u32 %v801, 7
        %v803 = vsub.s32 0, %v802
        %v804 = vrot.slane %v799, %v803
        %v808 = vunpack.c.l.b16 %v545
        %v809 = vunpack.c.l.b16 %v546
        %v810 = vpack.c.b16 %v809, %v808
        %v828 = vunpack.c.l.b16 %v783
        %v829 = vunpack.c.l.b16 %v784
        %v830 = vunpack.c.l.b16 %v785
        %v831 = vunpack.c.l.b16 %v786
        %v832 = vunpack.c.l.b16 %v787
        %v833 = vunpack.c.l.b16 %v788
        %v834 = vunpack.c.l.b16 %v789
        %v835 = vunpack.c.l.b16 %v790
        %v836 = vunpack.c.l.b16 %v791
        %v837 = vunpack.c.l.b16 %v792
        %v838 = vunpack.c.l.b16 %v793
        %v839 = vunpack.c.l.b16 %v794
        %v840 = vunpack.c.l.b16 %v795
        %v841 = vunpack.c.l.b16 %v796
        %v842 = vunpack.c.l.b16 %v797
        %v843 = vunpack.c.l.b16 %v798
        %v844 = vpack.c.b16 %v829, %v828
        %v845 = vpack.c.b16 %v831, %v830
        %v846 = vpack.c.b16 %v833, %v832
        %v847 = vpack.c.b16 %v835, %v834
        %v848 = vpack.c.b16 %v837, %v836
        %v849 = vpack.c.b16 %v839, %v838
        %v850 = vpack.c.b16 %v841, %v840
        %v851 = vpack.c.b16 %v843, %v842
        %860 = vmatprep.subr.bf16.mxu0 0
        %861 = vmatpush1.bf16.msra.mxu0 %v844
        %862 = vmatprep.subr.bf16.mxu0 0
        %863 = vmatpush1.bf16.msra.mxu0 %v845
        %864 = vmatprep.subr.bf16.mxu0 0
        %865 = vmatpush1.bf16.msra.mxu0 %v846
        %866 = vmatprep.subr.bf16.mxu0 0
        %867 = vmatpush1.bf16.msra.mxu0 %v847
        %868 = vmatprep.subr.bf16.mxu0 0
        %869 = vmatpush1.bf16.msra.mxu0 %v848
        %870 = vmatprep.subr.bf16.mxu0 0
        %871 = vmatpush1.bf16.msra.mxu0 %v849
        %872 = vmatprep.subr.bf16.mxu0 0
        %873 = vmatpush1.bf16.msra.mxu0 %v850
        %874 = vmatprep.subr.bf16.mxu0 0
        %875 = vmatpush1.bf16.msra.mxu0 %v851
        %876 = vmatprep.subr.bf16.mxu0 0
        %877 = vmatpush1.bf16.msra.mxu0 0
        %878 = vmatprep.subr.bf16.mxu0 0
        %879 = vmatpush1.bf16.msra.mxu0 0
        %880 = vmatprep.subr.bf16.mxu0 0
        %881 = vmatpush1.bf16.msra.mxu0 0
        %882 = vmatprep.subr.bf16.mxu0 0
        %883 = vmatpush1.bf16.msra.mxu0 0
        %884 = vmatprep.subr.bf16.mxu0 0
        %885 = vmatpush1.bf16.msra.mxu0 0
        %886 = vmatprep.subr.bf16.mxu0 0
        %887 = vmatpush1.bf16.msra.mxu0 0
        %888 = vmatprep.subr.bf16.mxu0 0
        %889 = vmatpush1.bf16.msra.mxu0 0
        %890 = vmatprep.subr.bf16.mxu0 0
        %891 = vmatpush1.bf16.msra.mxu0 0
        %892 = vmatprep.mubr.bf16.mxu0 0
        %893 = vmatmul.mubr.bf16.gmra.mrb[0].mxu0 %v810
        %v894 = vpop.f32.mrb[0].mxu0
        %v895 = vadd.f32 %v804, %v894
        %v896 = vpop.f32.mrb[0].mxu0
        %v897 = vpop.f32.mrb[0].mxu0
        %v898 = vadd.f32 %v804, %v897
        %v899 = vpop.f32.mrb[0].mxu0
        %900 = vdwg.mxu0
        %v901 = vpack.c.bf16 %v662, %v659
        %v902 = vpack.c.bf16 %v780, %v777
        %v903 = vpack.c.bf16 %v898, %v895
        %vm904 = vcmask 523264
        %v906 = vsel %vm904, %v901, 0
        %v909 = vsel %vm904, %v902, 0
        %911 = vmatprep.subr.bf16.mxu0 0
        %912 = vmatpush1.bf16.xpose.msra.mxu0 %v909
        %913 = vmatprep.subr.bf16.mxu0 0
        %914 = vmatpush1.bf16.xpose.msra.mxu0 0
        %915 = vmatprep.subr.bf16.mxu0 0
        %916 = vmatpush1.bf16.xpose.msra.mxu0 0
        %917 = vmatprep.subr.bf16.mxu0 0
        %918 = vmatpush1.bf16.xpose.msra.mxu0 0
        %919 = vmatprep.subr.bf16.mxu0 0
        %920 = vmatpush1.bf16.xpose.msra.mxu0 0
        %921 = vmatprep.subr.bf16.mxu0 0
        %922 = vmatpush1.bf16.xpose.msra.mxu0 0
        %923 = vmatprep.subr.bf16.mxu0 0
        %924 = vmatpush1.bf16.xpose.msra.mxu0 0
        %925 = vmatprep.subr.bf16.mxu0 0
        %926 = vmatpush1.bf16.xpose.msra.mxu0 0
        %927 = vmatprep.subr.bf16.mxu0 0
        %928 = vmatpush1.bf16.xpose.msra.mxu0 0
        %929 = vmatprep.subr.bf16.mxu0 0
        %930 = vmatpush1.bf16.xpose.msra.mxu0 0
        %931 = vmatprep.subr.bf16.mxu0 0
        %932 = vmatpush1.bf16.xpose.msra.mxu0 0
        %933 = vmatprep.subr.bf16.mxu0 0
        %934 = vmatpush1.bf16.xpose.msra.mxu0 0
        %935 = vmatprep.subr.bf16.mxu0 0
        %936 = vmatpush1.bf16.xpose.msra.mxu0 0
        %937 = vmatprep.subr.bf16.mxu0 0
        %938 = vmatpush1.bf16.xpose.msra.mxu0 0
        %939 = vmatprep.subr.bf16.mxu0 0
        %940 = vmatpush1.bf16.xpose.msra.mxu0 0
        %941 = vmatprep.subr.bf16.mxu0 0
        %942 = vmatpush1.bf16.xpose.msra.mxu0 0
        %943 = vmatprep.mubr.bf16.mxu0 0
        %944 = vmatmul.mubr.bf16.gmra.mrb[0].mxu0 %v906
        %v945 = vpop.f32.mrb[0].mxu0
        %v946 = vadd.f32 0.0, %v945
        %v947 = vpop.f32.mrb[0].mxu0
        %v948 = vpop.f32.mrb[0].mxu0
        %v949 = vadd.f32 0.0, %v948
        %v950 = vpop.f32.mrb[0].mxu0
        %951 = vdwg.mxu0
        %vm952 = vcmask 130048
        %v953 = vsel %vm952, %v946, -inf
        %954 = vmax.xlane.f32.xlu0 %v953
        %v955 = vpop.xlane.xlu0 %954
        %v956 = vsel %vm952, %v949, -inf
        %957 = vmax.xlane.f32.xlu0 %v956
        %v958 = vpop.xlane.xlu0 %957
        %v959 = vsub.f32 %v946, %v955
        %v960 = vsub.f32 %v949, %v958
        %v961 = vmul.f32 %v959, 1.442695
        %v962 = vpow.pop %v961
        %v963 = vmul.f32 %v960, 1.442695
        %v964 = vpow.pop %v963
        %v965 = vsel %vm952, %v962, 0.0
        %966 = vadd.xlane.f32.xlu0 %v965
        %v967 = vpop.xlane.xlu0 %966
        %v968 = vsel %vm952, %v964, 0.0
        %969 = vadd.xlane.f32.xlu0 %v968
        %v970 = vpop.xlane.xlu0 %969
        %v971 = vpack.c.bf16 %v964, %v962
        %v973 = vsel %vm952, %v971, 0
        %975 = vmatprep.subr.bf16.mxu0 0
        %976 = vmatpush1.bf16.msra.mxu0 %v903
        %977 = vmatprep.subr.bf16.mxu0 0
        %978 = vmatpush1.bf16.msra.mxu0 0
        %979 = vmatprep.subr.bf16.mxu0 0
        %980 = vmatpush1.bf16.msra.mxu0 0
        %981 = vmatprep.subr.bf16.mxu0 0
        %982 = vmatpush1.bf16.msra.mxu0 0
        %983 = vmatprep.subr.bf16.mxu0 0
        %984 = vmatpush1.bf16.msra.mxu0 0
        %985 = vmatprep.subr.bf16.mxu0 0
        %986 = vmatpush1.bf16.msra.mxu0 0
        %987 = vmatprep.subr.bf16.mxu0 0
        %988 = vmatpush1.bf16.msra.mxu0 0
        %989 = vmatprep.subr.bf16.mxu0 0
        %990 = vmatpush1.bf16.msra.mxu0 0
        %991 = vmatprep.subr.bf16.mxu0 0
        %992 = vmatpush1.bf16.msra.mxu0 0
        %993 = vmatprep.subr.bf16.mxu0 0
        %994 = vmatpush1.bf16.msra.mxu0 0
        %995 = vmatprep.subr.bf16.mxu0 0
        %996 = vmatpush1.bf16.msra.mxu0 0
        %997 = vmatprep.subr.bf16.mxu0 0
        %998 = vmatpush1.bf16.msra.mxu0 0
        %999 = vmatprep.subr.bf16.mxu0 0
        %1000 = vmatpush1.bf16.msra.mxu0 0
        %1001 = vmatprep.subr.bf16.mxu0 0
        %1002 = vmatpush1.bf16.msra.mxu0 0
        %1003 = vmatprep.subr.bf16.mxu0 0
        %1004 = vmatpush1.bf16.msra.mxu0 0
        %1005 = vmatprep.subr.bf16.mxu0 0
        %1006 = vmatpush1.bf16.msra.mxu0 0
        %1007 = vmatprep.mubr.bf16.mxu0 0
        %1008 = vmatmul.mubr.bf16.gmra.mrb[0].mxu0 %v973
        %v1009 = vpop.f32.mrb[0].mxu0
        %v1010 = vadd.f32 0.0, %v1009
        %v1011 = vpop.f32.mrb[0].mxu0
        %v1012 = vpop.f32.mrb[0].mxu0
        %v1013 = vadd.f32 0.0, %v1012
        %v1014 = vpop.f32.mrb[0].mxu0
        %1015 = vdwg.mxu0
        %v1016 = vrcp.pop %v967
        %v1017 = vrcp.pop %v970
        %v1018 = vmul.f32 %v1010, %v1016
        %v1019 = vmul.f32 %v1013, %v1017
        %v1020 = vpack.c.bf16 %v1019, %v1018
        %1022 = vrot.lane.b32.xlu0 %v901, 64
        %v1023 = vpop.permute.xlu0 %1022
        %1025 = vrot.lane.b32.xlu0 %v902, 64
        %v1026 = vpop.permute.xlu0 %1025
        %v1028 = vsel %vm904, %v1023, 0
        %v1031 = vsel %vm904, %v1026, 0
        %1033 = vmatprep.subr.bf16.mxu0 0
        %1034 = vmatpush1.bf16.xpose.msra.mxu0 %v1031
        %1035 = vmatprep.subr.bf16.mxu0 0
        %1036 = vmatpush1.bf16.xpose.msra.mxu0 0
        %1037 = vmatprep.subr.bf16.mxu0 0
        %1038 = vmatpush1.bf16.xpose.msra.mxu0 0
        %1039 = vmatprep.subr.bf16.mxu0 0
        %1040 = vmatpush1.bf16.xpose.msra.mxu0 0
        %1041 = vmatprep.subr.bf16.mxu0 0
        %1042 = vmatpush1.bf16.xpose.msra.mxu0 0
        %1043 = vmatprep.subr.bf16.mxu0 0
        %1044 = vmatpush1.bf16.xpose.msra.mxu0 0
        %1045 = vmatprep.subr.bf16.mxu0 0
        %1046 = vmatpush1.bf16.xpose.msra.mxu0 0
        %1047 = vmatprep.subr.bf16.mxu0 0
        %1048 = vmatpush1.bf16.xpose.msra.mxu0 0
        %1049 = vmatprep.subr.bf16.mxu0 0
        %1050 = vmatpush1.bf16.xpose.msra.mxu0 0
        %1051 = vmatprep.subr.bf16.mxu0 0
        %1052 = vmatpush1.bf16.xpose.msra.mxu0 0
        %1053 = vmatprep.subr.bf16.mxu0 0
        %1054 = vmatpush1.bf16.xpose.msra.mxu0 0
        %1055 = vmatprep.subr.bf16.mxu0 0
        %1056 = vmatpush1.bf16.xpose.msra.mxu0 0
        %1057 = vmatprep.subr.bf16.mxu0 0
        %1058 = vmatpush1.bf16.xpose.msra.mxu0 0
        %1059 = vmatprep.subr.bf16.mxu0 0
        %1060 = vmatpush1.bf16.xpose.msra.mxu0 0
        %1061 = vmatprep.subr.bf16.mxu0 0
        %1062 = vmatpush1.bf16.xpose.msra.mxu0 0
        %1063 = vmatprep.subr.bf16.mxu0 0
        %1064 = vmatpush1.bf16.xpose.msra.mxu0 0
        %1065 = vmatprep.mubr.bf16.mxu0 0
        %1066 = vmatmul.mubr.bf16.gmra.mrb[0].mxu0 %v1028
        %v1067 = vpop.f32.mrb[0].mxu0
        %v1068 = vadd.f32 0.0, %v1067
        %v1069 = vpop.f32.mrb[0].mxu0
        %v1070 = vpop.f32.mrb[0].mxu0
        %v1071 = vadd.f32 0.0, %v1070
        %v1072 = vpop.f32.mrb[0].mxu0
        %1073 = vdwg.mxu0
        %v1074 = vsel %vm952, %v1068, -inf
        %1075 = vmax.xlane.f32.xlu0 %v1074
        %v1076 = vpop.xlane.xlu0 %1075
        %v1077 = vsel %vm952, %v1071, -inf
        %1078 = vmax.xlane.f32.xlu0 %v1077
        %v1079 = vpop.xlane.xlu0 %1078
        %v1080 = vsub.f32 %v1068, %v1076
        %v1081 = vsub.f32 %v1071, %v1079
        %v1082 = vmul.f32 %v1080, 1.442695
        %v1083 = vpow.pop %v1082
        %v1084 = vmul.f32 %v1081, 1.442695
        %v1085 = vpow.pop %v1084
        %v1086 = vsel %vm952, %v1083, 0.0
        %1087 = vadd.xlane.f32.xlu0 %v1086
        %v1088 = vpop.xlane.xlu0 %1087
        %v1089 = vsel %vm952, %v1085, 0.0
        %1090 = vadd.xlane.f32.xlu0 %v1089
        %v1091 = vpop.xlane.xlu0 %1090
        %v1092 = vpack.c.bf16 %v1085, %v1083
        %1094 = vrot.lane.b32.xlu0 %v903, 64
        %v1095 = vpop.permute.xlu0 %1094
        %v1098 = vsel %vm952, %v1092, 0
        %1100 = vmatprep.subr.bf16.mxu0 0
        %1101 = vmatpush1.bf16.msra.mxu0 %v1095
        %1102 = vmatprep.subr.bf16.mxu0 0
        %1103 = vmatpush1.bf16.msra.mxu0 0
        %1104 = vmatprep.subr.bf16.mxu0 0
        %1105 = vmatpush1.bf16.msra.mxu0 0
        %1106 = vmatprep.subr.bf16.mxu0 0
        %1107 = vmatpush1.bf16.msra.mxu0 0
        %1108 = vmatprep.subr.bf16.mxu0 0
        %1109 = vmatpush1.bf16.msra.mxu0 0
        %1110 = vmatprep.subr.bf16.mxu0 0
        %1111 = vmatpush1.bf16.msra.mxu0 0
        %1112 = vmatprep.subr.bf16.mxu0 0
        %1113 = vmatpush1.bf16.msra.mxu0 0
        %1114 = vmatprep.subr.bf16.mxu0 0
        %1115 = vmatpush1.bf16.msra.mxu0 0
        %1116 = vmatprep.subr.bf16.mxu0 0
        %1117 = vmatpush1.bf16.msra.mxu0 0
        %1118 = vmatprep.subr.bf16.mxu0 0
        %1119 = vmatpush1.bf16.msra.mxu0 0
        %1120 = vmatprep.subr.bf16.mxu0 0
        %1121 = vmatpush1.bf16.msra.mxu0 0
        %1122 = vmatprep.subr.bf16.mxu0 0
        %1123 = vmatpush1.bf16.msra.mxu0 0
        %1124 = vmatprep.subr.bf16.mxu0 0
        %1125 = vmatpush1.bf16.msra.mxu0 0
        %1126 = vmatprep.subr.bf16.mxu0 0
        %1127 = vmatpush1.bf16.msra.mxu0 0
        %1128 = vmatprep.subr.bf16.mxu0 0
        %1129 = vmatpush1.bf16.msra.mxu0 0
        %1130 = vmatprep.subr.bf16.mxu0 0
        %1131 = vmatpush1.bf16.msra.mxu0 0
        %1132 = vmatprep.mubr.bf16.mxu0 0
        %1133 = vmatmul.mubr.bf16.gmra.mrb[0].mxu0 %v1098
        %v1134 = vpop.f32.mrb[0].mxu0
        %v1135 = vadd.f32 0.0, %v1134
        %v1136 = vpop.f32.mrb[0].mxu0
        %v1137 = vpop.f32.mrb[0].mxu0
        %v1138 = vadd.f32 0.0, %v1137
        %v1139 = vpop.f32.mrb[0].mxu0
        %1140 = vdwg.mxu0
        %v1141 = vrcp.pop %v1088
        %v1142 = vrcp.pop %v1091
        %v1143 = vmul.f32 %v1135, %v1141
        %v1144 = vmul.f32 %v1138, %v1142
        %v1145 = vpack.c.bf16 %v1144, %v1143
        %1147 = vrot.lane.b32.xlu0 %v1145, 64
        %v1148 = vpop.permute.xlu0 %1147
        %v1151 = vsel %vm904, %v1020, %v1148
        %v1153 = vld [vmem:[#allocation13] sm:$0xf]
        %v1154 = vld [vmem:[#allocation13 + $0x4] sm:$0xf]
        %v1155 = vld [vmem:[#allocation13 + $0x8] sm:$0xf]
        %v1156 = vld [vmem:[#allocation13 + $0xc] sm:$0xf]
        %v1157 = vld [vmem:[#allocation13 + $0x10] sm:$0xf]
        %v1158 = vld [vmem:[#allocation13 + $0x14] sm:$0xf]
        %v1159 = vld [vmem:[#allocation13 + $0x18] sm:$0xf]
        %v1160 = vld [vmem:[#allocation13 + $0x1c] sm:$0xf]
        %v1161 = vld [vmem:[#allocation13 + $0x20] sm:$0xf]
        %v1162 = vld [vmem:[#allocation13 + $0x24] sm:$0xf]
        %v1163 = vld [vmem:[#allocation13 + $0x28] sm:$0xf]
        %v1164 = vld [vmem:[#allocation13 + $0x2c] sm:$0xf]
        %v1165 = vld [vmem:[#allocation13 + $0x30] sm:$0xf]
        %v1166 = vld [vmem:[#allocation13 + $0x34] sm:$0xf]
        %v1167 = vld [vmem:[#allocation13 + $0x38] sm:$0xf]
        %v1168 = vld [vmem:[#allocation13 + $0x3c] sm:$0xf]
        %v1169 = vld [vmem:[%s10] sm:$0x1]
        %v1171 = vlaneseq
        %v1172 = vshrl.u32 %v1171, 7
        %v1173 = vsub.s32 0, %v1172
        %v1174 = vrot.slane %v1169, %v1173
        %v1192 = vunpack.c.l.b16 %v1153
        %v1193 = vunpack.c.l.b16 %v1154
        %v1194 = vunpack.c.l.b16 %v1155
        %v1195 = vunpack.c.l.b16 %v1156
        %v1196 = vunpack.c.l.b16 %v1157
        %v1197 = vunpack.c.l.b16 %v1158
        %v1198 = vunpack.c.l.b16 %v1159
        %v1199 = vunpack.c.l.b16 %v1160
        %v1200 = vunpack.c.l.b16 %v1161
        %v1201 = vunpack.c.l.b16 %v1162
        %v1202 = vunpack.c.l.b16 %v1163
        %v1203 = vunpack.c.l.b16 %v1164
        %v1204 = vunpack.c.l.b16 %v1165
        %v1205 = vunpack.c.l.b16 %v1166
        %v1206 = vunpack.c.l.b16 %v1167
        %v1207 = vunpack.c.l.b16 %v1168
        %v1208 = vpack.c.b16 %v1193, %v1192
        %v1209 = vpack.c.b16 %v1195, %v1194
        %v1210 = vpack.c.b16 %v1197, %v1196
        %v1211 = vpack.c.b16 %v1199, %v1198
        %v1212 = vpack.c.b16 %v1201, %v1200
        %v1213 = vpack.c.b16 %v1203, %v1202
        %v1214 = vpack.c.b16 %v1205, %v1204
        %v1215 = vpack.c.b16 %v1207, %v1206
        %1224 = vmatprep.subr.bf16.mxu0 0
        %1225 = vmatpush1.bf16.msra.mxu0 %v1208
        %1226 = vmatprep.subr.bf16.mxu0 0
        %1227 = vmatpush1.bf16.msra.mxu0 %v1209
        %1228 = vmatprep.subr.bf16.mxu0 0
        %1229 = vmatpush1.bf16.msra.mxu0 %v1210
        %1230 = vmatprep.subr.bf16.mxu0 0
        %1231 = vmatpush1.bf16.msra.mxu0 %v1211
        %1232 = vmatprep.subr.bf16.mxu0 0
        %1233 = vmatpush1.bf16.msra.mxu0 %v1212
        %1234 = vmatprep.subr.bf16.mxu0 0
        %1235 = vmatpush1.bf16.msra.mxu0 %v1213
        %1236 = vmatprep.subr.bf16.mxu0 0
        %1237 = vmatpush1.bf16.msra.mxu0 %v1214
        %1238 = vmatprep.subr.bf16.mxu0 0
        %1239 = vmatpush1.bf16.msra.mxu0 %v1215
        %1240 = vmatprep.subr.bf16.mxu0 0
        %1241 = vmatpush1.bf16.msra.mxu0 0
        %1242 = vmatprep.subr.bf16.mxu0 0
        %1243 = vmatpush1.bf16.msra.mxu0 0
        %1244 = vmatprep.subr.bf16.mxu0 0
        %1245 = vmatpush1.bf16.msra.mxu0 0
        %1246 = vmatprep.subr.bf16.mxu0 0
        %1247 = vmatpush1.bf16.msra.mxu0 0
        %1248 = vmatprep.subr.bf16.mxu0 0
        %1249 = vmatpush1.bf16.msra.mxu0 0
        %1250 = vmatprep.subr.bf16.mxu0 0
        %1251 = vmatpush1.bf16.msra.mxu0 0
        %1252 = vmatprep.subr.bf16.mxu0 0
        %1253 = vmatpush1.bf16.msra.mxu0 0
        %1254 = vmatprep.subr.bf16.mxu0 0
        %1255 = vmatpush1.bf16.msra.mxu0 0
        %1256 = vmatprep.mubr.bf16.mxu0 0
        %1257 = vmatmul.mubr.bf16.gmra.mrb[0].mxu0 %v1151
        %v1258 = vpop.f32.mrb[0].mxu0
        %v1259 = vadd.f32 %v1174, %v1258
        %v1260 = vpop.f32.mrb[0].mxu0
        %v1261 = vpop.f32.mrb[0].mxu0
        %v1262 = vadd.f32 %v1174, %v1261
        %v1263 = vpop.f32.mrb[0].mxu0
        %1264 = vdwg.mxu0
        %1265 = vst [vmem:[%s539] sm:$0xff] %v1259
        %1266 = vst [vmem:[%s539 + $0x8] sm:$0xff] %v1262
        %s1267 = sand.u32 %s287, 1
        %s1268 = scalar_lea.sflag [#allocation4], %s1267
        %s1269 = sand.u32 %s287, 1
        %s1270 = smul.addr %s1269, 16
        %s1271 = scalar_lea.vmem [#allocation14], %s1270
        // Predicated region
        $region93: #{tpu_custom_call.1} parent=63 // pred_check
          %p1272 = pneg %p297
        $region94: #{tpu_custom_call.1} parent=63 // pred_check_branch
          %1274 = sbr.rel (%p1272) target = $region96
        $region95: #{tpu_custom_call.1} parent=63 // pred_region
          %s1276 = ssub.s32 256, 256
          %1277 = vsyncadd %s1268, %s1276
          %s1278 = smul.addr %s33, 2
          %s1279 = smul.addr %s1278, 128
          %s1280 = scalar_lea.hbm %s11, %s1279
          %s1281 = sshll.u32 %s1271, 4
          %s1282 = int_to_ptr.vmem [resolvable:$true] %s1281
          %1287 = dma.vmem_to_hbm [thread:$0]  %s1282, 256, %s1280, %s1268, 128, 128, 8
        $region96: #{tpu_custom_call.1} parent=63 // pred_fallthru
          _
      $region64: #{tpu_custom_call.1} parent=5 // pred_fallthru
        _
      %p1288 = scmp.le.s32.totalorder 2, %s28
      // Predicated region
      $region97: #{tpu_custom_call.1} parent=5 // pred_check
        %p1289 = pneg %p1288
      $region98: #{tpu_custom_call.1} parent=5 // pred_check_branch
        %1291 = sbr.rel (%p1289) target = $region100
      $region99: #{tpu_custom_call.1} parent=5 // pred_region
        %s1292 = ssub.s32 %s28, 2
        // Predicated region
        $region101: #{tpu_custom_call.1} parent=99 // pred_check
          %p1293 = pneg %p303
        $region102: #{tpu_custom_call.1} parent=99 // pred_check_branch
          %1295 = sbr.rel (%p1293) target = $region104
        $region103: #{tpu_custom_call.1} parent=99 // pred_region
          %s1296 = sand.u32 %s288, 1
          %s1297 = scalar_lea.sflag [#allocation4], %s1296
          %s1298 = sand.u32 %s288, 1
          %s1299 = smul.addr %s1298, 16
          %s1300 = scalar_lea.vmem [#allocation14], %s1299
          %1301 = dma.done %s1297, 256
        $region104: #{tpu_custom_call.1} parent=99 // pred_fallthru
          _
      $region100: #{tpu_custom_call.1} parent=5 // pred_fallthru
        _
    $region6: #{tpu_custom_call.1} parent=1 // loop_footer
      %s32 = sadd.s32 1, %s28
    $region7: #{tpu_custom_call.1} parent=1 // loop_footer_branch
      %27 = sbr.rel target = $region3
    $region8: #{tpu_custom_call.1} parent=1 // loop_exit
      _
    %1302 = vsyncpa [#allocation3], 1
    %s1303 = scalar_lea.sflag [#allocation3], 1
    %1304 = vsyncpa %s1303, 1
    %1305 = vsyncpa [#allocation6], 1
    %s1306 = scalar_lea.sflag [#allocation6], 1
    %1307 = vsyncpa %s1306, 1
    %1308 = vsyncpa [#allocation9], 1
    %1309 = vsyncpa [#allocation12], 1
    %1310 = vsyncpa [#allocation4], 1
    %s1311 = scalar_lea.sflag [#allocation4], 1
    %1312 = vsyncpa %s1311, 1

// kernel: tpu_custom_call.1
$region0: #{tpu_custom_call.1}
  #allocation0 [shape = 'u32[]', space=smem, size = 0x4, offset = 0x4, fixed_abs, tag = 'smem constant byte address 0x4 - core index']
  #allocation1 [shape = 'u32[144,128]{1,0:T(1,128)}', space=vmem, size = 0x12000, scoped, tag = 'internal scratch']
  %s0 = inlined_call_operand.hbm [shape: bf16[2,16,128], index: 0, kind: input, shape index: {}]
  %s1 = inlined_call_operand.hbm [shape: bf16[2,16,128], index: 1, kind: input, shape index: {}]
  %s2 = inlined_call_operand.hbm [shape: bf16[2,16,128], index: 2, kind: input, shape index: {}]
  %s3 = inlined_call_operand.hbm [shape: bf16[128,128], index: 3, kind: input, shape index: {}]
  %s4 = inlined_call_operand.vmem [shape: f32[1,128], index: 4, kind: input, shape index: {}]
  %s5 = inlined_call_operand.hbm [shape: bf16[128,128], index: 5, kind: input, shape index: {}]
  %s6 = inlined_call_operand.vmem [shape: f32[1,128], index: 6, kind: input, shape index: {}]
  %s7 = inlined_call_operand.hbm [shape: bf16[128,128], index: 7, kind: input, shape index: {}]
  %s8 = inlined_call_operand.vmem [shape: f32[1,128], index: 8, kind: input, shape index: {}]
  %s9 = inlined_call_operand.hbm [shape: bf16[128,128], index: 9, kind: input, shape index: {}]
  %s10 = inlined_call_operand.vmem [shape: f32[1,128], index: 10, kind: input, shape index: {}]
  %s11 = inlined_call_operand.hbm [shape: f32[2,16,128], index: 11, kind: output, shape index: {}]
  %s12 = sld [smem:[#allocation0]]
  $region105: #{tpu_custom_call.1} parent=0
    _
  %s14 = ssub.s32 1, %s12
  %s15 = scalar_select 0, %s14, %s12
  $region1: #{tpu_custom_call.1} parent=0
    #allocation2 [shape = 'u8[8192]{0}', space=vmem, size = 0x2000, scoped, tag = 'input window, operand 0']
    #allocation3 [shape = 's32[2]{0}', space=sflag, size = 0x8, scoped, tag = 'scoped memory for tpu_custom_call.1']
    #allocation4 [shape = 's32[2]{0}', space=sflag, size = 0x8, scoped, tag = 'scoped memory for tpu_custom_call.1']
    #allocation5 [shape = 'u8[8192]{0}', space=vmem, size = 0x2000, scoped, tag = 'input window, operand 1']
    #allocation6 [shape = 's32[2]{0}', space=sflag, size = 0x8, scoped, tag = 'scoped memory for tpu_custom_call.1']
    #allocation7 [shape = 'u8[8192]{0}', space=vmem, size = 0x2000, scoped, tag = 'input window, operand 2']
    #allocation8 [shape = 'u8[32768]{0}', space=vmem, size = 0x8000, scoped, tag = 'input window, operand 3, single buffered']
    #allocation9 [shape = 's32[1]{0}', space=sflag, size = 0x4, scoped, tag = 'scoped memory for tpu_custom_call.1']
    #allocation10 [shape = 'u8[32768]{0}', space=vmem, size = 0x8000, scoped, tag = 'input window, operand 5, single buffered']
    #allocation11 [shape = 'u8[32768]{0}', space=vmem, size = 0x8000, scoped, tag = 'input window, operand 7, single buffered']
    #allocation12 [shape = 's32[1]{0}', space=sflag, size = 0x4, scoped, tag = 'scoped memory for tpu_custom_call.1']
    #allocation13 [shape = 'u8[32768]{0}', space=vmem, size = 0x8000, scoped, tag = 'input window, operand 9, single buffered']
    #allocation14 [shape = 'u8[16384]{0}', space=vmem, size = 0x4000, scoped, tag = 'output window, operand 0']
    %16 = vsyncpa [#allocation3], 0
    %s17 = scalar_lea.sflag [#allocation3], 1
    %18 = vsyncpa %s17, 0
    %19 = vsyncpa [#allocation6], 0
    %s20 = scalar_lea.sflag [#allocation6], 1
    %21 = vsyncpa %s20, 0
    %22 = vsyncpa [#allocation9], 0
    %23 = vsyncpa [#allocation12], 0
    %24 = vsyncpa [#allocation4], 0
    %s25 = scalar_lea.sflag [#allocation4], 1
    %26 = vsyncpa %s25, 0
    loop: start=0, step=1, limit=4
    $region2: #{tpu_custom_call.1} parent=1 // loop_pre_header
      _
    $region3: #{tpu_custom_call.1} parent=1 // loop_header
      %s28 = sphi 0, %s32
      %p29 = scmp.ge.s32.totalorder %s28, 4
      %s38 = sphi 0, %s40
      %s41 = sphi 0, %s38
      %s42 = sphi 0, %s41
      %s58 = sphi 0, %s42
      %s64 = sphi 0, %s66
      %s67 = sphi 0, %s64
      %s68 = sphi 0, %s67
      %s84 = sphi 0, %s68
      %s90 = sphi 0, %s92
      %s93 = sphi 0, %s90
      %s94 = sphi 0, %s93
      %s110 = sphi 0, %s94
      %s114 = sphi 0, %s114
      %s116 = sphi 0, %s114
      %s117 = sphi 0, %s116
      %s131 = sphi 0, %s117
      %s135 = sphi 0, %s135
      %s137 = sphi 0, %s135
      %s138 = sphi 0, %s137
      %s152 = sphi 0, %s138
      %s156 = sphi 0, %s156
      %s158 = sphi 0, %s156
      %s159 = sphi 0, %s158
      %s173 = sphi 0, %s159
      %s177 = sphi 0, %s177
      %s179 = sphi 0, %s177
      %s180 = sphi 0, %s179
      %s194 = sphi 0, %s180
      %s198 = sphi 0, %s198
      %s200 = sphi 0, %s198
      %s201 = sphi 0, %s200
      %s215 = sphi 0, %s201
      %s219 = sphi 0, %s219
      %s221 = sphi 0, %s219
      %s222 = sphi 0, %s221
      %s236 = sphi 0, %s222
      %s240 = sphi 0, %s240
      %s242 = sphi 0, %s240
      %s243 = sphi 0, %s242
      %s257 = sphi 0, %s243
      %s261 = sphi 0, %s261
      %s263 = sphi 0, %s261
      %s264 = sphi 0, %s263
      %s278 = sphi 0, %s264
      %s284 = sphi 0, %s286
      %s287 = sphi 0, %s284
      %s288 = sphi 0, %s287
      %s304 = sphi 0, %s288
    $region4: #{tpu_custom_call.1} parent=1 // loop_header_branch
      %31 = sbr.rel (%p29) target = $region8
    $region5: #{tpu_custom_call.1} parent=1 // loop_body
      %s33 = ssub.s32 %s28, 1
      %s34 = ssub.s32 %s28, 2
      %s35 = sadd.s32 %s28, 1
      %s36 = ssub.s32 %s28, %s35
      %p37 = scmp.eq.s32.totalorder %s36, 0
      %s39 = sadd.s32 %s38, 1
      %s40 = scalar_select %p37, %s38, %s39
      %p43 = pneg %p37
      %p44 = scmp.eq.s32.totalorder %s28, 1
      %p45 = por %p43, %p44
      %p46 = scmp.ne.s32.totalorder %s38, %s41
      %p47 = scmp.eq.s32.totalorder %s28, 0
      %p48 = por %p46, %p47
      %p49 = scmp.ne.s32.totalorder %s38, %s41
      %p50 = scmp.eq.s32.totalorder %s33, 1
      %p51 = por %p49, %p50
      %p52 = scmp.ne.s32.totalorder %s41, %s42
      %p53 = scmp.eq.s32.totalorder %s33, 0
      %p54 = por %p52, %p53
      %p55 = scmp.ne.s32.totalorder %s41, %s42
      %p56 = scmp.eq.s32.totalorder %s34, 1
      %p57 = por %p55, %p56
      %p59 = scmp.ne.s32.totalorder %s42, %s58
      %p60 = scmp.eq.s32.totalorder %s34, 0
      %p61 = por %p59, %p60
      %s62 = ssub.s32 %s28, %s35
      %p63 = scmp.eq.s32.totalorder %s62, 0
      %s65 = sadd.s32 %s64, 1
      %s66 = scalar_select %p63, %s64, %s65
      %p69 = pneg %p63
      %p70 = scmp.eq.s32.totalorder %s28, 1
      %p71 = por %p69, %p70
      %p72 = scmp.ne.s32.totalorder %s64, %s67
      %p73 = scmp.eq.s32.totalorder %s28, 0
      %p74 = por %p72, %p73
      %p75 = scmp.ne.s32.totalorder %s64, %s67
      %p76 = scmp.eq.s32.totalorder %s33, 1
      %p77 = por %p75, %p76
      %p78 = scmp.ne.s32.totalorder %s67, %s68
      %p79 = scmp.eq.s32.totalorder %s33, 0
      %p80 = por %p78, %p79
      %p81 = scmp.ne.s32.totalorder %s67, %s68
      %p82 = scmp.eq.s32.totalorder %s34, 1
      %p83 = por %p81, %p82
      %p85 = scmp.ne.s32.totalorder %s68, %s84
      %p86 = scmp.eq.s32.totalorder %s34, 0
      %p87 = por %p85, %p86
      %s88 = ssub.s32 %s28, %s35
      %p89 = scmp.eq.s32.totalorder %s88, 0
      %s91 = sadd.s32 %s90, 1
      %s92 = scalar_select %p89, %s90, %s91
      %p95 = pneg %p89
      %p96 = scmp.eq.s32.totalorder %s28, 1
      %p97 = por %p95, %p96
      %p98 = scmp.ne.s32.totalorder %s90, %s93
      %p99 = scmp.eq.s32.totalorder %s28, 0
      %p100 = por %p98, %p99
      %p101 = scmp.ne.s32.totalorder %s90, %s93
      %p102 = scmp.eq.s32.totalorder %s33, 1
      %p103 = por %p101, %p102
      %p104 = scmp.ne.s32.totalorder %s93, %s94
      %p105 = scmp.eq.s32.totalorder %s33, 0
      %p106 = por %p104, %p105
      %p107 = scmp.ne.s32.totalorder %s93, %s94
      %p108 = scmp.eq.s32.totalorder %s34, 1
      %p109 = por %p107, %p108
      %p111 = scmp.ne.s32.totalorder %s94, %s110
      %p112 = scmp.eq.s32.totalorder %s34, 0
      %p113 = por %p111, %p112
      %s115 = sadd.s32 %s114, 1
      %p118 = scmp.eq.s32.totalorder %s28, 1
      %p119 = scmp.ne.s32.totalorder %s114, %s116
      %p120 = scmp.eq.s32.totalorder %s28, 0
      %p121 = por %p119, %p120
      %p122 = scmp.ne.s32.totalorder %s114, %s116
      %p123 = scmp.eq.s32.totalorder %s33, 1
      %p124 = por %p122, %p123
      %p125 = scmp.ne.s32.totalorder %s116, %s117
      %p126 = scmp.eq.s32.totalorder %s33, 0
      %p127 = por %p125, %p126
      %p128 = scmp.ne.s32.totalorder %s116, %s117
      %p129 = scmp.eq.s32.totalorder %s34, 1
      %p130 = por %p128, %p129
      %p132 = scmp.ne.s32.totalorder %s117, %s131
      %p133 = scmp.eq.s32.totalorder %s34, 0
      %p134 = por %p132, %p133
      %s136 = sadd.s32 %s135, 1
      %p139 = scmp.eq.s32.totalorder %s28, 1
      %p140 = scmp.ne.s32.totalorder %s135, %s137
      %p141 = scmp.eq.s32.totalorder %s28, 0
      %p142 = por %p140, %p141
      %p143 = scmp.ne.s32.totalorder %s135, %s137
      %p144 = scmp.eq.s32.totalorder %s33, 1
      %p145 = por %p143, %p144
      %p146 = scmp.ne.s32.totalorder %s137, %s138
      %p147 = scmp.eq.s32.totalorder %s33, 0
      %p148 = por %p146, %p147
      %p149 = scmp.ne.s32.totalorder %s137, %s138
      %p150 = scmp.eq.s32.totalorder %s34, 1
      %p151 = por %p149, %p150
      %p153 = scmp.ne.s32.totalorder %s138, %s152
      %p154 = scmp.eq.s32.totalorder %s34, 0
      %p155 = por %p153, %p154
      %s157 = sadd.s32 %s156, 1
      %p160 = scmp.eq.s32.totalorder %s28, 1
      %p161 = scmp.ne.s32.totalorder %s156, %s158
      %p162 = scmp.eq.s32.totalorder %s28, 0
      %p163 = por %p161, %p162
      %p164 = scmp.ne.s32.totalorder %s156, %s158
      %p165 = scmp.eq.s32.totalorder %s33, 1
      %p166 = por %p164, %p165
      %p167 = scmp.ne.s32.totalorder %s158, %s159
      %p168 = scmp.eq.s32.totalorder %s33, 0
      %p169 = por %p167, %p168
      %p170 = scmp.ne.s32.totalorder %s158, %s159
      %p171 = scmp.eq.s32.totalorder %s34, 1
      %p172 = por %p170, %p171
      %p174 = scmp.ne.s32.totalorder %s159, %s173
      %p175 = scmp.eq.s32.totalorder %s34, 0
      %p176 = por %p174, %p175
      %s178 = sadd.s32 %s177, 1
      %p181 = scmp.eq.s32.totalorder %s28, 1
      %p182 = scmp.ne.s32.totalorder %s177, %s179
      %p183 = scmp.eq.s32.totalorder %s28, 0
      %p184 = por %p182, %p183
      %p185 = scmp.ne.s32.totalorder %s177, %s179
      %p186 = scmp.eq.s32.totalorder %s33, 1
      %p187 = por %p185, %p186
      %p188 = scmp.ne.s32.totalorder %s179, %s180
      %p189 = scmp.eq.s32.totalorder %s33, 0
      %p190 = por %p188, %p189
      %p191 = scmp.ne.s32.totalorder %s179, %s180
      %p192 = scmp.eq.s32.totalorder %s34, 1
      %p193 = por %p191, %p192
      %p195 = scmp.ne.s32.totalorder %s180, %s194
      %p196 = scmp.eq.s32.totalorder %s34, 0
      %p197 = por %p195, %p196
      %s199 = sadd.s32 %s198, 1
      %p202 = scmp.eq.s32.totalorder %s28, 1
      %p203 = scmp.ne.s32.totalorder %s198, %s200
      %p204 = scmp.eq.s32.totalorder %s28, 0
      %p205 = por %p203, %p204
      %p206 = scmp.ne.s32.totalorder %s198, %s200
      %p207 = scmp.eq.s32.totalorder %s33, 1
      %p208 = por %p206, %p207
      %p209 = scmp.ne.s32.totalorder %s200, %s201
      %p210 = scmp.eq.s32.totalorder %s33, 0
      %p211 = por %p209, %p210
      %p212 = scmp.ne.s32.totalorder %s200, %s201
      %p213 = scmp.eq.s32.totalorder %s34, 1
      %p214 = por %p212, %p213
      %p216 = scmp.ne.s32.totalorder %s201, %s215
      %p217 = scmp.eq.s32.totalorder %s34, 0
      %p218 = por %p216, %p217
      %s220 = sadd.s32 %s219, 1
      %p223 = scmp.eq.s32.totalorder %s28, 1
      %p224 = scmp.ne.s32.totalorder %s219, %s221
      %p225 = scmp.eq.s32.totalorder %s28, 0
      %p226 = por %p224, %p225
      %p227 = scmp.ne.s32.totalorder %s219, %s221
      %p228 = scmp.eq.s32.totalorder %s33, 1
      %p229 = por %p227, %p228
      %p230 = scmp.ne.s32.totalorder %s221, %s222
      %p231 = scmp.eq.s32.totalorder %s33, 0
      %p232 = por %p230, %p231
      %p233 = scmp.ne.s32.totalorder %s221, %s222
      %p234 = scmp.eq.s32.totalorder %s34, 1
      %p235 = por %p233, %p234
      %p237 = scmp.ne.s32.totalorder %s222, %s236
      %p238 = scmp.eq.s32.totalorder %s34, 0
      %p239 = por %p237, %p238
      %s241 = sadd.s32 %s240, 1
      %p244 = scmp.eq.s32.totalorder %s28, 1
      %p245 = scmp.ne.s32.totalorder %s240, %s242
      %p246 = scmp.eq.s32.totalorder %s28, 0
      %p247 = por %p245, %p246
      %p248 = scmp.ne.s32.totalorder %s240, %s242
      %p249 = scmp.eq.s32.totalorder %s33, 1
      %p250 = por %p248, %p249
      %p251 = scmp.ne.s32.totalorder %s242, %s243
      %p252 = scmp.eq.s32.totalorder %s33, 0
      %p253 = por %p251, %p252
      %p254 = scmp.ne.s32.totalorder %s242, %s243
      %p255 = scmp.eq.s32.totalorder %s34, 1
      %p256 = por %p254, %p255
      %p258 = scmp.ne.s32.totalorder %s243, %s257
      %p259 = scmp.eq.s32.totalorder %s34, 0
      %p260 = por %p258, %p259
      %s262 = sadd.s32 %s261, 1
      %p265 = scmp.eq.s32.totalorder %s28, 1
      %p266 = scmp.ne.s32.totalorder %s261, %s263
      %p267 = scmp.eq.s32.totalorder %s28, 0
      %p268 = por %p266, %p267
      %p269 = scmp.ne.s32.totalorder %s261, %s263
      %p270 = scmp.eq.s32.totalorder %s33, 1
      %p271 = por %p269, %p270
      %p272 = scmp.ne.s32.totalorder %s263, %s264
      %p273 = scmp.eq.s32.totalorder %s33, 0
      %p274 = por %p272, %p273
      %p275 = scmp.ne.s32.totalorder %s263, %s264
      %p276 = scmp.eq.s32.totalorder %s34, 1
      %p277 = por %p275, %p276
      %p279 = scmp.ne.s32.totalorder %s264, %s278
      %p280 = scmp.eq.s32.totalorder %s34, 0
      %p281 = por %p279, %p280
      %s282 = ssub.s32 %s28, %s35
      %p283 = scmp.eq.s32.totalorder %s282, 0
      %s285 = sadd.s32 %s284, 1
      %s286 = scalar_select %p283, %s284, %s285
      %p289 = pneg %p283
      %p290 = scmp.eq.s32.totalorder %s28, 1
      %p291 = por %p289, %p290
      %p292 = scmp.ne.s32.totalorder %s284, %s287
      %p293 = scmp.eq.s32.totalorder %s28, 0
      %p294 = por %p292, %p293
      %p295 = scmp.ne.s32.totalorder %s284, %s287
      %p296 = scmp.eq.s32.totalorder %s33, 1
      %p297 = por %p295, %p296
      %p298 = scmp.ne.s32.totalorder %s287, %s288
      %p299 = scmp.eq.s32.totalorder %s33, 0
      %p300 = por %p298, %p299
      %p301 = scmp.ne.s32.totalorder %s287, %s288
      %p302 = scmp.eq.s32.totalorder %s34, 1
      %p303 = por %p301, %p302
      %p305 = scmp.ne.s32.totalorder %s288, %s304
      %p306 = scmp.eq.s32.totalorder %s34, 0
      %p307 = por %p305, %p306
      %p308 = scmp.le.s32.totalorder 1, %s28
      %p309 = scmp.lt.s32.totalorder %s28, 3
      %p310 = pnand %p308, %p309
      %p311 = pneg %p310
      // Predicated region
      $region9: #{tpu_custom_call.1} parent=5 // pred_check
        _
      $region10: #{tpu_custom_call.1} parent=5 // pred_check_branch
        %313 = sbr.rel (%p310) target = $region12
      $region11: #{tpu_custom_call.1} parent=5 // pred_region
        %s314 = ssub.s32 %s28, 1
        // Predicated region
        $region13: #{tpu_custom_call.1} parent=11 // pred_check
          %p315 = pneg %p127
        $region14: #{tpu_custom_call.1} parent=11 // pred_check_branch
          %317 = sbr.rel (%p315) target = $region16
        $region15: #{tpu_custom_call.1} parent=11 // pred_region
          %s319 = ssub.s32 1024, 1024
          %320 = vsyncadd [#allocation9], %s319
          %s321 = sshll.u32 [#allocation8], 4
          %s322 = int_to_ptr.vmem [resolvable:$true] %s321
          %327 = dma.hbm_to_vmem [thread:$0]  %s3, 1024, %s322, [#allocation9], 64, 64, 4
        $region16: #{tpu_custom_call.1} parent=11 // pred_fallthru
          _
        // Predicated region
        $region17: #{tpu_custom_call.1} parent=11 // pred_check
          %p328 = pneg %p148
        $region18: #{tpu_custom_call.1} parent=11 // pred_check_branch
          %330 = sbr.rel (%p328) target = $region20
        $region19: #{tpu_custom_call.1} parent=11 // pred_region
          _
        $region20: #{tpu_custom_call.1} parent=11 // pred_fallthru
          _
        // Predicated region
        $region21: #{tpu_custom_call.1} parent=11 // pred_check
          %p331 = pneg %p169
        $region22: #{tpu_custom_call.1} parent=11 // pred_check_branch
          %333 = sbr.rel (%p331) target = $region24
        $region23: #{tpu_custom_call.1} parent=11 // pred_region
          %s335 = ssub.s32 1024, 1024
          %336 = vsyncadd [#allocation9], %s335
          %s337 = sshll.u32 [#allocation10], 4
          %s338 = int_to_ptr.vmem [resolvable:$true] %s337
          %343 = dma.hbm_to_vmem [thread:$0]  %s5, 1024, %s338, [#allocation9], 64, 64, 4
        $region24: #{tpu_custom_call.1} parent=11 // pred_fallthru
          _
        // Predicated region
        $region25: #{tpu_custom_call.1} parent=11 // pred_check
          %p344 = pneg %p190
        $region26: #{tpu_custom_call.1} parent=11 // pred_check_branch
          %346 = sbr.rel (%p344) target = $region28
        $region27: #{tpu_custom_call.1} parent=11 // pred_region
          _
        $region28: #{tpu_custom_call.1} parent=11 // pred_fallthru
          _
        // Predicated region
        $region29: #{tpu_custom_call.1} parent=11 // pred_check
          %p347 = pneg %p211
        $region30: #{tpu_custom_call.1} parent=11 // pred_check_branch
          %349 = sbr.rel (%p347) target = $region32
        $region31: #{tpu_custom_call.1} parent=11 // pred_region
          %s351 = ssub.s32 1024, 1024
          %352 = vsyncadd [#allocation12], %s351
          %s353 = sshll.u32 [#allocation11], 4
          %s354 = int_to_ptr.vmem [resolvable:$true] %s353
          %359 = dma.hbm_to_vmem [thread:$0]  %s7, 1024, %s354, [#allocation12], 64, 64, 4
        $region32: #{tpu_custom_call.1} parent=11 // pred_fallthru
          _
        // Predicated region
        $region33: #{tpu_custom_call.1} parent=11 // pred_check
          %p360 = pneg %p232
        $region34: #{tpu_custom_call.1} parent=11 // pred_check_branch
          %362 = sbr.rel (%p360) target = $region36
        $region35: #{tpu_custom_call.1} parent=11 // pred_region
          _
        $region36: #{tpu_custom_call.1} parent=11 // pred_fallthru
          _
        // Predicated region
        $region37: #{tpu_custom_call.1} parent=11 // pred_check
          %p363 = pneg %p253
        $region38: #{tpu_custom_call.1} parent=11 // pred_check_branch
          %365 = sbr.rel (%p363) target = $region40
        $region39: #{tpu_custom_call.1} parent=11 // pred_region
          %s367 = ssub.s32 1024, 1024
          %368 = vsyncadd [#allocation12], %s367
          %s369 = sshll.u32 [#allocation13], 4
          %s370 = int_to_ptr.vmem [resolvable:$true] %s369
          %375 = dma.hbm_to_vmem [thread:$0]  %s9, 1024, %s370, [#allocation12], 64, 64, 4
        $region40: #{tpu_custom_call.1} parent=11 // pred_fallthru
          _
        // Predicated region
        $region41: #{tpu_custom_call.1} parent=11 // pred_check
          %p376 = pneg %p274
        $region42: #{tpu_custom_call.1} parent=11 // pred_check_branch
          %378 = sbr.rel (%p376) target = $region44
        $region43: #{tpu_custom_call.1} parent=11 // pred_region
          _
        $region44: #{tpu_custom_call.1} parent=11 // pred_fallthru
          _
      $region12: #{tpu_custom_call.1} parent=5 // pred_fallthru
        _
      %p379 = scmp.lt.s32.totalorder %s28, 2
      // Predicated region
      $region45: #{tpu_custom_call.1} parent=5 // pred_check
        %p380 = pneg %p379
      $region46: #{tpu_custom_call.1} parent=5 // pred_check_branch
        %382 = sbr.rel (%p380) target = $region48
      $region47: #{tpu_custom_call.1} parent=5 // pred_region
        // Predicated region
        $region49: #{tpu_custom_call.1} parent=47 // pred_check
          %p383 = pneg %p48
        $region50: #{tpu_custom_call.1} parent=47 // pred_check_branch
          %385 = sbr.rel (%p383) target = $region52
        $region51: #{tpu_custom_call.1} parent=47 // pred_region
          %s386 = sand.u32 %s38, 1
          %s387 = scalar_lea.sflag [#allocation3], %s386
          %s388 = sand.u32 %s38, 1
          %s389 = smul.addr %s388, 8
          %s390 = scalar_lea.vmem [#allocation2], %s389
          %s392 = ssub.s32 128, 128
          %393 = vsyncadd %s387, %s392
          %s394 = smul.addr %s28, 2
          %s395 = smul.addr %s394, 64
          %s396 = scalar_lea.hbm %s0, %s395
          %s397 = sshll.u32 %s390, 4
          %s398 = int_to_ptr.vmem [resolvable:$true] %s397
          %403 = dma.hbm_to_vmem [thread:$0]  %s396, 128, %s398, %s387, 64, 64, 4
        $region52: #{tpu_custom_call.1} parent=47 // pred_fallthru
          _
        // Predicated region
        $region53: #{tpu_custom_call.1} parent=47 // pred_check
          %p404 = pneg %p74
        $region54: #{tpu_custom_call.1} parent=47 // pred_check_branch
          %406 = sbr.rel (%p404) target = $region56
        $region55: #{tpu_custom_call.1} parent=47 // pred_region
          %s407 = sand.u32 %s28, 1
          %s408 = scalar_lea.sflag [#allocation6], %s407
          %s409 = sand.u32 %s64, 1
          %s410 = smul.addr %s409, 8
          %s411 = scalar_lea.vmem [#allocation5], %s410
          %s413 = ssub.s32 128, 128
          %414 = vsyncadd %s408, %s413
          %s415 = smul.addr %s28, 2
          %s416 = smul.addr %s415, 64
          %s417 = scalar_lea.hbm %s1, %s416
          %s418 = sshll.u32 %s411, 4
          %s419 = int_to_ptr.vmem [resolvable:$true] %s418
          %424 = dma.hbm_to_vmem [thread:$0]  %s417, 128, %s419, %s408, 64, 64, 4
        $region56: #{tpu_custom_call.1} parent=47 // pred_fallthru
          _
        // Predicated region
        $region57: #{tpu_custom_call.1} parent=47 // pred_check
          %p425 = pneg %p100
        $region58: #{tpu_custom_call.1} parent=47 // pred_check_branch
          %427 = sbr.rel (%p425) target = $region60
        $region59: #{tpu_custom_call.1} parent=47 // pred_region
          %s428 = sand.u32 %s28, 1
          %s429 = scalar_lea.sflag [#allocation6], %s428
          %s430 = sand.u32 %s90, 1
          %s431 = smul.addr %s430, 8
          %s432 = scalar_lea.vmem [#allocation7], %s431
          %s434 = ssub.s32 128, 128
          %435 = vsyncadd %s429, %s434
          %s436 = smul.addr %s28, 2
          %s437 = smul.addr %s436, 64
          %s438 = scalar_lea.hbm %s2, %s437
          %s439 = sshll.u32 %s432, 4
          %s440 = int_to_ptr.vmem [resolvable:$true] %s439
          %445 = dma.hbm_to_vmem [thread:$0]  %s438, 128, %s440, %s429, 64, 64, 4
        $region60: #{tpu_custom_call.1} parent=47 // pred_fallthru
          _
      $region48: #{tpu_custom_call.1} parent=5 // pred_fallthru
        _
      %p446 = scmp.le.s32.totalorder 1, %s28
      %p447 = scmp.lt.s32.totalorder %s28, 3
      %p448 = pnand %p446, %p447
      %p449 = pneg %p448
      // Predicated region
      $region61: #{tpu_custom_call.1} parent=5 // pred_check
        _
      $region62: #{tpu_custom_call.1} parent=5 // pred_check_branch
        %451 = sbr.rel (%p448) target = $region64
      $region63: #{tpu_custom_call.1} parent=5 // pred_region
        %s452 = ssub.s32 %s28, 1
        %s453 = sand.u32 %s41, 1
        %s454 = scalar_lea.sflag [#allocation3], %s453
        %s455 = sand.u32 %s41, 1
        %s456 = smul.addr %s455, 8
        %s457 = scalar_lea.vmem [#allocation2], %s456
        // Predicated region
        $region65: #{tpu_custom_call.1} parent=63 // pred_check
          %p458 = pneg %p54
        $region66: #{tpu_custom_call.1} parent=63 // pred_check_branch
          %460 = sbr.rel (%p458) target = $region68
        $region67: #{tpu_custom_call.1} parent=63 // pred_region
          %461 = dma.done %s454, 128
        $region68: #{tpu_custom_call.1} parent=63 // pred_fallthru
          _
        %s462 = sand.u32 %s33, 1
        %s463 = scalar_lea.sflag [#allocation6], %s462
        %s464 = sand.u32 %s67, 1
        %s465 = smul.addr %s464, 8
        %s466 = scalar_lea.vmem [#allocation5], %s465
        // Predicated region
        $region69: #{tpu_custom_call.1} parent=63 // pred_check
          %p467 = pneg %p80
        $region70: #{tpu_custom_call.1} parent=63 // pred_check_branch
          %469 = sbr.rel (%p467) target = $region72
        $region71: #{tpu_custom_call.1} parent=63 // pred_region
          %470 = dma.done %s463, 128
        $region72: #{tpu_custom_call.1} parent=63 // pred_fallthru
          _
        %s471 = sand.u32 %s33, 1
        %s472 = scalar_lea.sflag [#allocation6], %s471
        %s473 = sand.u32 %s93, 1
        %s474 = smul.addr %s473, 8
        %s475 = scalar_lea.vmem [#allocation7], %s474
        // Predicated region
        $region73: #{tpu_custom_call.1} parent=63 // pred_check
          %p476 = pneg %p106
        $region74: #{tpu_custom_call.1} parent=63 // pred_check_branch
          %478 = sbr.rel (%p476) target = $region76
        $region75: #{tpu_custom_call.1} parent=63 // pred_region
          %479 = dma.done %s472, 128
        $region76: #{tpu_custom_call.1} parent=63 // pred_fallthru
          _
        // Predicated region
        $region77: #{tpu_custom_call.1} parent=63 // pred_check
          %p480 = pneg %p127
        $region78: #{tpu_custom_call.1} parent=63 // pred_check_branch
          %482 = sbr.rel (%p480) target = $region80
        $region79: #{tpu_custom_call.1} parent=63 // pred_region
          %483 = dma.done [#allocation9], 1024
        $region80: #{tpu_custom_call.1} parent=63 // pred_fallthru
          _
        // Predicated region
        $region81: #{tpu_custom_call.1} parent=63 // pred_check
          %p484 = pneg %p169
        $region82: #{tpu_custom_call.1} parent=63 // pred_check_branch
          %486 = sbr.rel (%p484) target = $region84
        $region83: #{tpu_custom_call.1} parent=63 // pred_region
          %487 = dma.done [#allocation9], 1024
        $region84: #{tpu_custom_call.1} parent=63 // pred_fallthru
          _
        // Predicated region
        $region85: #{tpu_custom_call.1} parent=63 // pred_check
          %p488 = pneg %p211
        $region86: #{tpu_custom_call.1} parent=63 // pred_check_branch
          %490 = sbr.rel (%p488) target = $region88
        $region87: #{tpu_custom_call.1} parent=63 // pred_region
          %491 = dma.done [#allocation12], 1024
        $region88: #{tpu_custom_call.1} parent=63 // pred_fallthru
          _
        // Predicated region
        $region89: #{tpu_custom_call.1} parent=63 // pred_check
          %p492 = pneg %p253
        $region90: #{tpu_custom_call.1} parent=63 // pred_check_branch
          %494 = sbr.rel (%p492) target = $region92
        $region91: #{tpu_custom_call.1} parent=63 // pred_region
          %495 = dma.done [#allocation12], 1024
        $region92: #{tpu_custom_call.1} parent=63 // pred_fallthru
          _
        %s496 = sand.u32 %s41, 1
        %s497 = scalar_lea.sflag [#allocation3], %s496
        %s498 = sand.u32 %s41, 1
        %s499 = smul.addr %s498, 8
        %s500 = scalar_lea.vmem [#allocation2], %s499
        %p501 = pneg %p54
        %p502 = pneg %p51
        %s503 = sand.u32 %s33, 1
        %s504 = scalar_lea.sflag [#allocation6], %s503
        %s505 = sand.u32 %s67, 1
        %s506 = smul.addr %s505, 8
        %s507 = scalar_lea.vmem [#allocation5], %s506
        %p508 = pneg %p80
        %p509 = pneg %p77
        %s510 = sand.u32 %s33, 1
        %s511 = scalar_lea.sflag [#allocation6], %s510
        %s512 = sand.u32 %s93, 1
        %s513 = smul.addr %s512, 8
        %s514 = scalar_lea.vmem [#allocation7], %s513
        %p515 = pneg %p106
        %p516 = pneg %p103
        %p517 = pneg %p127
        %p518 = pneg %p124
        %p519 = pneg %p148
        %p520 = pneg %p145
        %p521 = pneg %p169
        %p522 = pneg %p166
        %p523 = pneg %p190
        %p524 = pneg %p187
        %p525 = pneg %p211
        %p526 = pneg %p208
        %p527 = pneg %p232
        %p528 = pneg %p229
        %p529 = pneg %p253
        %p530 = pneg %p250
        %p531 = pneg %p274
        %p532 = pneg %p271
        %p533 = pneg %p300
        %p534 = pneg %p297
        %s535 = sand.u32 %s287, 1
        %s536 = scalar_lea.sflag [#allocation4], %s535
        %s537 = sand.u32 %s287, 1
        %s538 = smul.addr %s537, 16
        %s539 = scalar_lea.vmem [#allocation14], %s538
        %v541 = vld [vmem:[%s457] sm:$0xf]
        %v542 = vld [vmem:[%s457 + $0x4] sm:$0xf]
        %v543 = vld [vmem:[%s466] sm:$0xf]
        %v544 = vld [vmem:[%s466 + $0x4] sm:$0xf]
        %v545 = vld [vmem:[%s475] sm:$0xf]
        %v546 = vld [vmem:[%s475 + $0x4] sm:$0xf]
        %v547 = vld [vmem:[#allocation8] sm:$0xf]
        %v548 = vld [vmem:[#allocation8 + $0x4] sm:$0xf]
        %v549 = vld [vmem:[#allocation8 + $0x8] sm:$0xf]
        %v550 = vld [vmem:[#allocation8 + $0xc] sm:$0xf]
        %v551 = vld [vmem:[#allocation8 + $0x10] sm:$0xf]
        %v552 = vld [vmem:[#allocation8 + $0x14] sm:$0xf]
        %v553 = vld [vmem:[#allocation8 + $0x18] sm:$0xf]
        %v554 = vld [vmem:[#allocation8 + $0x1c] sm:$0xf]
        %v555 = vld [vmem:[#allocation8 + $0x20] sm:$0xf]
        %v556 = vld [vmem:[#allocation8 + $0x24] sm:$0xf]
        %v557 = vld [vmem:[#allocation8 + $0x28] sm:$0xf]
        %v558 = vld [vmem:[#allocation8 + $0x2c] sm:$0xf]
        %v559 = vld [vmem:[#allocation8 + $0x30] sm:$0xf]
        %v560 = vld [vmem:[#allocation8 + $0x34] sm:$0xf]
        %v561 = vld [vmem:[#allocation8 + $0x38] sm:$0xf]
        %v562 = vld [vmem:[#allocation8 + $0x3c] sm:$0xf]
        %v563 = vld [vmem:[%s4] sm:$0x1]
        %v565 = vlaneseq
        %v566 = vshrl.u32 %v565, 7
        %v567 = vsub.s32 0, %v566
        %v568 = vrot.slane %v563, %v567
        %v572 = vunpack.c.l.b16 %v541
        %v573 = vunpack.c.l.b16 %v542
        %v574 = vpack.c.b16 %v573, %v572
        %v592 = vunpack.c.l.b16 %v547
        %v593 = vunpack.c.l.b16 %v548
        %v594 = vunpack.c.l.b16 %v549
        %v595 = vunpack.c.l.b16 %v550
        %v596 = vunpack.c.l.b16 %v551
        %v597 = vunpack.c.l.b16 %v552
        %v598 = vunpack.c.l.b16 %v553
        %v599 = vunpack.c.l.b16 %v554
        %v600 = vunpack.c.l.b16 %v555
        %v601 = vunpack.c.l.b16 %v556
        %v602 = vunpack.c.l.b16 %v557
        %v603 = vunpack.c.l.b16 %v558
        %v604 = vunpack.c.l.b16 %v559
        %v605 = vunpack.c.l.b16 %v560
        %v606 = vunpack.c.l.b16 %v561
        %v607 = vunpack.c.l.b16 %v562
        %v608 = vpack.c.b16 %v593, %v592
        %v609 = vpack.c.b16 %v595, %v594
        %v610 = vpack.c.b16 %v597, %v596
        %v611 = vpack.c.b16 %v599, %v598
        %v612 = vpack.c.b16 %v601, %v600
        %v613 = vpack.c.b16 %v603, %v602
        %v614 = vpack.c.b16 %v605, %v604
        %v615 = vpack.c.b16 %v607, %v606
        %624 = vmatprep.subr.bf16.mxu0 0
        %625 = vmatpush1.bf16.msra.mxu0 %v608
        %626 = vmatprep.subr.bf16.mxu0 0
        %627 = vmatpush1.bf16.msra.mxu0 %v609
        %628 = vmatprep.subr.bf16.mxu0 0
        %629 = vmatpush1.bf16.msra.mxu0 %v610
        %630 = vmatprep.subr.bf16.mxu0 0
        %631 = vmatpush1.bf16.msra.mxu0 %v611
        %632 = vmatprep.subr.bf16.mxu0 0
        %633 = vmatpush1.bf16.msra.mxu0 %v612
        %634 = vmatprep.subr.bf16.mxu0 0
        %635 = vmatpush1.bf16.msra.mxu0 %v613
        %636 = vmatprep.subr.bf16.mxu0 0
        %637 = vmatpush1.bf16.msra.mxu0 %v614
        %638 = vmatprep.subr.bf16.mxu0 0
        %639 = vmatpush1.bf16.msra.mxu0 %v615
        %640 = vmatprep.subr.bf16.mxu0 0
        %641 = vmatpush1.bf16.msra.mxu0 0
        %642 = vmatprep.subr.bf16.mxu0 0
        %643 = vmatpush1.bf16.msra.mxu0 0
        %644 = vmatprep.subr.bf16.mxu0 0
        %645 = vmatpush1.bf16.msra.mxu0 0
        %646 = vmatprep.subr.bf16.mxu0 0
        %647 = vmatpush1.bf16.msra.mxu0 0
        %648 = vmatprep.subr.bf16.mxu0 0
        %649 = vmatpush1.bf16.msra.mxu0 0
        %650 = vmatprep.subr.bf16.mxu0 0
        %651 = vmatpush1.bf16.msra.mxu0 0
        %652 = vmatprep.subr.bf16.mxu0 0
        %653 = vmatpush1.bf16.msra.mxu0 0
        %654 = vmatprep.subr.bf16.mxu0 0
        %655 = vmatpush1.bf16.msra.mxu0 0
        %656 = vmatprep.mubr.bf16.mxu0 0
        %657 = vmatmul.mubr.bf16.gmra.mrb[0].mxu0 %v574
        %v658 = vpop.f32.mrb[0].mxu0
        %v659 = vadd.f32 %v568, %v658
        %v660 = vpop.f32.mrb[0].mxu0
        %v661 = vpop.f32.mrb[0].mxu0
        %v662 = vadd.f32 %v568, %v661
        %v663 = vpop.f32.mrb[0].mxu0
        %664 = vdwg.mxu0
        %v665 = vld [vmem:[#allocation10] sm:$0xf]
        %v666 = vld [vmem:[#allocation10 + $0x4] sm:$0xf]
        %v667 = vld [vmem:[#allocation10 + $0x8] sm:$0xf]
        %v668 = vld [vmem:[#allocation10 + $0xc] sm:$0xf]
        %v669 = vld [vmem:[#allocation10 + $0x10] sm:$0xf]
        %v670 = vld [vmem:[#allocation10 + $0x14] sm:$0xf]
        %v671 = vld [vmem:[#allocation10 + $0x18] sm:$0xf]
        %v672 = vld [vmem:[#allocation10 + $0x1c] sm:$0xf]
        %v673 = vld [vmem:[#allocation10 + $0x20] sm:$0xf]
        %v674 = vld [vmem:[#allocation10 + $0x24] sm:$0xf]
        %v675 = vld [vmem:[#allocation10 + $0x28] sm:$0xf]
        %v676 = vld [vmem:[#allocation10 + $0x2c] sm:$0xf]
        %v677 = vld [vmem:[#allocation10 + $0x30] sm:$0xf]
        %v678 = vld [vmem:[#allocation10 + $0x34] sm:$0xf]
        %v679 = vld [vmem:[#allocation10 + $0x38] sm:$0xf]
        %v680 = vld [vmem:[#allocation10 + $0x3c] sm:$0xf]
        %v681 = vld [vmem:[%s6] sm:$0x1]
        %v683 = vlaneseq
        %v684 = vshrl.u32 %v683, 7
        %v685 = vsub.s32 0, %v684
        %v686 = vrot.slane %v681, %v685
        %v690 = vunpack.c.l.b16 %v543
        %v691 = vunpack.c.l.b16 %v544
        %v692 = vpack.c.b16 %v691, %v690
        %v710 = vunpack.c.l.b16 %v665
        %v711 = vunpack.c.l.b16 %v666
        %v712 = vunpack.c.l.b16 %v667
        %v713 = vunpack.c.l.b16 %v668
        %v714 = vunpack.c.l.b16 %v669
        %v715 = vunpack.c.l.b16 %v670
        %v716 = vunpack.c.l.b16 %v671
        %v717 = vunpack.c.l.b16 %v672
        %v718 = vunpack.c.l.b16 %v673
        %v719 = vunpack.c.l.b16 %v674
        %v720 = vunpack.c.l.b16 %v675
        %v721 = vunpack.c.l.b16 %v676
        %v722 = vunpack.c.l.b16 %v677
        %v723 = vunpack.c.l.b16 %v678
        %v724 = vunpack.c.l.b16 %v679
        %v725 = vunpack.c.l.b16 %v680
        %v726 = vpack.c.b16 %v711, %v710
        %v727 = vpack.c.b16 %v713, %v712
        %v728 = vpack.c.b16 %v715, %v714
        %v729 = vpack.c.b16 %v717, %v716
        %v730 = vpack.c.b16 %v719, %v718
        %v731 = vpack.c.b16 %v721, %v720
        %v732 = vpack.c.b16 %v723, %v722
        %v733 = vpack.c.b16 %v725, %v724
        %742 = vmatprep.subr.bf16.mxu0 0
        %743 = vmatpush1.bf16.msra.mxu0 %v726
        %744 = vmatprep.subr.bf16.mxu0 0
        %745 = vmatpush1.bf16.msra.mxu0 %v727
        %746 = vmatprep.subr.bf16.mxu0 0
        %747 = vmatpush1.bf16.msra.mxu0 %v728
        %748 = vmatprep.subr.bf16.mxu0 0
        %749 = vmatpush1.bf16.msra.mxu0 %v729
        %750 = vmatprep.subr.bf16.mxu0 0
        %751 = vmatpush1.bf16.msra.mxu0 %v730
        %752 = vmatprep.subr.bf16.mxu0 0
        %753 = vmatpush1.bf16.msra.mxu0 %v731
        %754 = vmatprep.subr.bf16.mxu0 0
        %755 = vmatpush1.bf16.msra.mxu0 %v732
        %756 = vmatprep.subr.bf16.mxu0 0
        %757 = vmatpush1.bf16.msra.mxu0 %v733
        %758 = vmatprep.subr.bf16.mxu0 0
        %759 = vmatpush1.bf16.msra.mxu0 0
        %760 = vmatprep.subr.bf16.mxu0 0
        %761 = vmatpush1.bf16.msra.mxu0 0
        %762 = vmatprep.subr.bf16.mxu0 0
        %763 = vmatpush1.bf16.msra.mxu0 0
        %764 = vmatprep.subr.bf16.mxu0 0
        %765 = vmatpush1.bf16.msra.mxu0 0
        %766 = vmatprep.subr.bf16.mxu0 0
        %767 = vmatpush1.bf16.msra.mxu0 0
        %768 = vmatprep.subr.bf16.mxu0 0
        %769 = vmatpush1.bf16.msra.mxu0 0
        %770 = vmatprep.subr.bf16.mxu0 0
        %771 = vmatpush1.bf16.msra.mxu0 0
        %772 = vmatprep.subr.bf16.mxu0 0
        %773 = vmatpush1.bf16.msra.mxu0 0
        %774 = vmatprep.mubr.bf16.mxu0 0
        %775 = vmatmul.mubr.bf16.gmra.mrb[0].mxu0 %v692
        %v776 = vpop.f32.mrb[0].mxu0
        %v777 = vadd.f32 %v686, %v776
        %v778 = vpop.f32.mrb[0].mxu0
        %v779 = vpop.f32.mrb[0].mxu0
        %v780 = vadd.f32 %v686, %v779
        %v781 = vpop.f32.mrb[0].mxu0
        %782 = vdwg.mxu0
        %v783 = vld [vmem:[#allocation11] sm:$0xf]
        %v784 = vld [vmem:[#allocation11 + $0x4] sm:$0xf]
        %v785 = vld [vmem:[#allocation11 + $0x8] sm:$0xf]
        %v786 = vld [vmem:[#allocation11 + $0xc] sm:$0xf]
        %v787 = vld [vmem:[#allocation11 + $0x10] sm:$0xf]
        %v788 = vld [vmem:[#allocation11 + $0x14] sm:$0xf]
        %v789 = vld [vmem:[#allocation11 + $0x18] sm:$0xf]
        %v790 = vld [vmem:[#allocation11 + $0x1c] sm:$0xf]
        %v791 = vld [vmem:[#allocation11 + $0x20] sm:$0xf]
        %v792 = vld [vmem:[#allocation11 + $0x24] sm:$0xf]
        %v793 = vld [vmem:[#allocation11 + $0x28] sm:$0xf]
        %v794 = vld [vmem:[#allocation11 + $0x2c] sm:$0xf]
        %v795 = vld [vmem:[#allocation11 + $0x30] sm:$0xf]
        %v796 = vld [vmem:[#allocation11 + $0x34] sm:$0xf]
        %v797 = vld [vmem:[#allocation11 + $0x38] sm:$0xf]
        %v798 = vld [vmem:[#allocation11 + $0x3c] sm:$0xf]
        %v799 = vld [vmem:[%s8] sm:$0x1]
        %v801 = vlaneseq
        %v802 = vshrl.u32 %v801, 7
        %v803 = vsub.s32 0, %v802
        %v804 = vrot.slane %v799, %v803
        %v808 = vunpack.c.l.b16 %v545
        %v809 = vunpack.c.l.b16 %v546
        %v810 = vpack.c.b16 %v809, %v808
        %v828 = vunpack.c.l.b16 %v783
        %v829 = vunpack.c.l.b16 %v784
        %v830 = vunpack.c.l.b16 %v785
        %v831 = vunpack.c.l.b16 %v786
        %v832 = vunpack.c.l.b16 %v787
        %v833 = vunpack.c.l.b16 %v788
        %v834 = vunpack.c.l.b16 %v789
        %v835 = vunpack.c.l.b16 %v790
        %v836 = vunpack.c.l.b16 %v791
        %v837 = vunpack.c.l.b16 %v792
        %v838 = vunpack.c.l.b16 %v793
        %v839 = vunpack.c.l.b16 %v794
        %v840 = vunpack.c.l.b16 %v795
        %v841 = vunpack.c.l.b16 %v796
        %v842 = vunpack.c.l.b16 %v797
        %v843 = vunpack.c.l.b16 %v798
        %v844 = vpack.c.b16 %v829, %v828
        %v845 = vpack.c.b16 %v831, %v830
        %v846 = vpack.c.b16 %v833, %v832
        %v847 = vpack.c.b16 %v835, %v834
        %v848 = vpack.c.b16 %v837, %v836
        %v849 = vpack.c.b16 %v839, %v838
        %v850 = vpack.c.b16 %v841, %v840
        %v851 = vpack.c.b16 %v843, %v842
        %860 = vmatprep.subr.bf16.mxu0 0
        %861 = vmatpush1.bf16.msra.mxu0 %v844
        %862 = vmatprep.subr.bf16.mxu0 0
        %863 = vmatpush1.bf16.msra.mxu0 %v845
        %864 = vmatprep.subr.bf16.mxu0 0
        %865 = vmatpush1.bf16.msra.mxu0 %v846
        %866 = vmatprep.subr.bf16.mxu0 0
        %867 = vmatpush1.bf16.msra.mxu0 %v847
        %868 = vmatprep.subr.bf16.mxu0 0
        %869 = vmatpush1.bf16.msra.mxu0 %v848
        %870 = vmatprep.subr.bf16.mxu0 0
        %871 = vmatpush1.bf16.msra.mxu0 %v849
        %872 = vmatprep.subr.bf16.mxu0 0
        %873 = vmatpush1.bf16.msra.mxu0 %v850
        %874 = vmatprep.subr.bf16.mxu0 0
        %875 = vmatpush1.bf16.msra.mxu0 %v851
        %876 = vmatprep.subr.bf16.mxu0 0
        %877 = vmatpush1.bf16.msra.mxu0 0
        %878 = vmatprep.subr.bf16.mxu0 0
        %879 = vmatpush1.bf16.msra.mxu0 0
        %880 = vmatprep.subr.bf16.mxu0 0
        %881 = vmatpush1.bf16.msra.mxu0 0
        %882 = vmatprep.subr.bf16.mxu0 0
        %883 = vmatpush1.bf16.msra.mxu0 0
        %884 = vmatprep.subr.bf16.mxu0 0
        %885 = vmatpush1.bf16.msra.mxu0 0
        %886 = vmatprep.subr.bf16.mxu0 0
        %887 = vmatpush1.bf16.msra.mxu0 0
        %888 = vmatprep.subr.bf16.mxu0 0
        %889 = vmatpush1.bf16.msra.mxu0 0
        %890 = vmatprep.subr.bf16.mxu0 0
        %891 = vmatpush1.bf16.msra.mxu0 0
        %892 = vmatprep.mubr.bf16.mxu0 0
        %893 = vmatmul.mubr.bf16.gmra.mrb[0].mxu0 %v810
        %v894 = vpop.f32.mrb[0].mxu0
        %v895 = vadd.f32 %v804, %v894
        %v896 = vpop.f32.mrb[0].mxu0
        %v897 = vpop.f32.mrb[0].mxu0
        %v898 = vadd.f32 %v804, %v897
        %v899 = vpop.f32.mrb[0].mxu0
        %900 = vdwg.mxu0
        %v901 = vpack.c.bf16 %v662, %v659
        %v902 = vpack.c.bf16 %v780, %v777
        %v903 = vpack.c.bf16 %v898, %v895
        %vm904 = vcmask 523264
        %v906 = vsel %vm904, %v901, 0
        %v909 = vsel %vm904, %v902, 0
        %911 = vmatprep.subr.bf16.mxu0 0
        %912 = vmatpush1.bf16.xpose.msra.mxu0 %v909
        %913 = vmatprep.subr.bf16.mxu0 0
        %914 = vmatpush1.bf16.xpose.msra.mxu0 0
        %915 = vmatprep.subr.bf16.mxu0 0
        %916 = vmatpush1.bf16.xpose.msra.mxu0 0
        %917 = vmatprep.subr.bf16.mxu0 0
        %918 = vmatpush1.bf16.xpose.msra.mxu0 0
        %919 = vmatprep.subr.bf16.mxu0 0
        %920 = vmatpush1.bf16.xpose.msra.mxu0 0
        %921 = vmatprep.subr.bf16.mxu0 0
        %922 = vmatpush1.bf16.xpose.msra.mxu0 0
        %923 = vmatprep.subr.bf16.mxu0 0
        %924 = vmatpush1.bf16.xpose.msra.mxu0 0
        %925 = vmatprep.subr.bf16.mxu0 0
        %926 = vmatpush1.bf16.xpose.msra.mxu0 0
        %927 = vmatprep.subr.bf16.mxu0 0
        %928 = vmatpush1.bf16.xpose.msra.mxu0 0
        %929 = vmatprep.subr.bf16.mxu0 0
        %930 = vmatpush1.bf16.xpose.msra.mxu0 0
        %931 = vmatprep.subr.bf16.mxu0 0
        %932 = vmatpush1.bf16.xpose.msra.mxu0 0
        %933 = vmatprep.subr.bf16.mxu0 0
        %934 = vmatpush1.bf16.xpose.msra.mxu0 0
        %935 = vmatprep.subr.bf16.mxu0 0
        %936 = vmatpush1.bf16.xpose.msra.mxu0 0
        %937 = vmatprep.subr.bf16.mxu0 0
        %938 = vmatpush1.bf16.xpose.msra.mxu0 0
        %939 = vmatprep.subr.bf16.mxu0 0
        %940 = vmatpush1.bf16.xpose.msra.mxu0 0
        %941 = vmatprep.subr.bf16.mxu0 0
        %942 = vmatpush1.bf16.xpose.msra.mxu0 0
        %943 = vmatprep.mubr.bf16.mxu0 0
        %944 = vmatmul.mubr.bf16.gmra.mrb[0].mxu0 %v906
        %v945 = vpop.f32.mrb[0].mxu0
        %v946 = vadd.f32 0.0, %v945
        %v947 = vpop.f32.mrb[0].mxu0
        %v948 = vpop.f32.mrb[0].mxu0
        %v949 = vadd.f32 0.0, %v948
        %v950 = vpop.f32.mrb[0].mxu0
        %951 = vdwg.mxu0
        %vm952 = vcmask 130048
        %v953 = vsel %vm952, %v946, -inf
        %954 = vmax.xlane.f32.xlu0 %v953
        %v955 = vpop.xlane.xlu0 %954
        %v956 = vsel %vm952, %v949, -inf
        %957 = vmax.xlane.f32.xlu0 %v956
        %v958 = vpop.xlane.xlu0 %957
        %v959 = vsub.f32 %v946, %v955
        %v960 = vsub.f32 %v949, %v958
        %v961 = vmul.f32 %v959, 1.442695
        %v962 = vpow.pop %v961
        %v963 = vmul.f32 %v960, 1.442695
        %v964 = vpow.pop %v963
        %v965 = vsel %vm952, %v962, 0.0
        %966 = vadd.xlane.f32.xlu0 %v965
        %v967 = vpop.xlane.xlu0 %966
        %v968 = vsel %vm952, %v964, 0.0
        %969 = vadd.xlane.f32.xlu0 %v968
        %v970 = vpop.xlane.xlu0 %969
        %v971 = vpack.c.bf16 %v964, %v962
        %v973 = vsel %vm952, %v971, 0
        %975 = vmatprep.subr.bf16.mxu0 0
        %976 = vmatpush1.bf16.msra.mxu0 %v903
        %977 = vmatprep.subr.bf16.mxu0 0
        %978 = vmatpush1.bf16.msra.mxu0 0
        %979 = vmatprep.subr.bf16.mxu0 0
        %980 = vmatpush1.bf16.msra.mxu0 0
        %981 = vmatprep.subr.bf16.mxu0 0
        %982 = vmatpush1.bf16.msra.mxu0 0
        %983 = vmatprep.subr.bf16.mxu0 0
        %984 = vmatpush1.bf16.msra.mxu0 0
        %985 = vmatprep.subr.bf16.mxu0 0
        %986 = vmatpush1.bf16.msra.mxu0 0
        %987 = vmatprep.subr.bf16.mxu0 0
        %988 = vmatpush1.bf16.msra.mxu0 0
        %989 = vmatprep.subr.bf16.mxu0 0
        %990 = vmatpush1.bf16.msra.mxu0 0
        %991 = vmatprep.subr.bf16.mxu0 0
        %992 = vmatpush1.bf16.msra.mxu0 0
        %993 = vmatprep.subr.bf16.mxu0 0
        %994 = vmatpush1.bf16.msra.mxu0 0
        %995 = vmatprep.subr.bf16.mxu0 0
        %996 = vmatpush1.bf16.msra.mxu0 0
        %997 = vmatprep.subr.bf16.mxu0 0
        %998 = vmatpush1.bf16.msra.mxu0 0
        %999 = vmatprep.subr.bf16.mxu0 0
        %1000 = vmatpush1.bf16.msra.mxu0 0
        %1001 = vmatprep.subr.bf16.mxu0 0
        %1002 = vmatpush1.bf16.msra.mxu0 0
        %1003 = vmatprep.subr.bf16.mxu0 0
        %1004 = vmatpush1.bf16.msra.mxu0 0
        %1005 = vmatprep.subr.bf16.mxu0 0
        %1006 = vmatpush1.bf16.msra.mxu0 0
        %1007 = vmatprep.mubr.bf16.mxu0 0
        %1008 = vmatmul.mubr.bf16.gmra.mrb[0].mxu0 %v973
        %v1009 = vpop.f32.mrb[0].mxu0
        %v1010 = vadd.f32 0.0, %v1009
        %v1011 = vpop.f32.mrb[0].mxu0
        %v1012 = vpop.f32.mrb[0].mxu0
        %v1013 = vadd.f32 0.0, %v1012
        %v1014 = vpop.f32.mrb[0].mxu0
        %1015 = vdwg.mxu0
        %v1016 = vrcp.pop %v967
        %v1017 = vrcp.pop %v970
        %v1018 = vmul.f32 %v1010, %v1016
        %v1019 = vmul.f32 %v1013, %v1017
        %v1020 = vpack.c.bf16 %v1019, %v1018
        %1022 = vrot.lane.b32.xlu0 %v901, 64
        %v1023 = vpop.permute.xlu0 %1022
        %1025 = vrot.lane.b32.xlu0 %v902, 64
        %v1026 = vpop.permute.xlu0 %1025
        %v1028 = vsel %vm904, %v1023, 0
        %v1031 = vsel %vm904, %v1026, 0
        %1033 = vmatprep.subr.bf16.mxu0 0
        %1034 = vmatpush1.bf16.xpose.msra.mxu0 %v1031
        %1035 = vmatprep.subr.bf16.mxu0 0
        %1036 = vmatpush1.bf16.xpose.msra.mxu0 0
        %1037 = vmatprep.subr.bf16.mxu0 0
        %1038 = vmatpush1.bf16.xpose.msra.mxu0 0
        %1039 = vmatprep.subr.bf16.mxu0 0
        %1040 = vmatpush1.bf16.xpose.msra.mxu0 0
        %1041 = vmatprep.subr.bf16.mxu0 0
        %1042 = vmatpush1.bf16.xpose.msra.mxu0 0
        %1043 = vmatprep.subr.bf16.mxu0 0
        %1044 = vmatpush1.bf16.xpose.msra.mxu0 0
        %1045 = vmatprep.subr.bf16.mxu0 0
        %1046 = vmatpush1.bf16.xpose.msra.mxu0 0
        %1047 = vmatprep.subr.bf16.mxu0 0
        %1048 = vmatpush1.bf16.xpose.msra.mxu0 0
        %1049 = vmatprep.subr.bf16.mxu0 0
        %1050 = vmatpush1.bf16.xpose.msra.mxu0 0
        %1051 = vmatprep.subr.bf16.mxu0 0
        %1052 = vmatpush1.bf16.xpose.msra.mxu0 0
        %1053 = vmatprep.subr.bf16.mxu0 0
        %1054 = vmatpush1.bf16.xpose.msra.mxu0 0
        %1055 = vmatprep.subr.bf16.mxu0 0
        %1056 = vmatpush1.bf16.xpose.msra.mxu0 0
        %1057 = vmatprep.subr.bf16.mxu0 0
        %1058 = vmatpush1.bf16.xpose.msra.mxu0 0
        %1059 = vmatprep.subr.bf16.mxu0 0
        %1060 = vmatpush1.bf16.xpose.msra.mxu0 0
        %1061 = vmatprep.subr.bf16.mxu0 0
        %1062 = vmatpush1.bf16.xpose.msra.mxu0 0
        %1063 = vmatprep.subr.bf16.mxu0 0
        %1064 = vmatpush1.bf16.xpose.msra.mxu0 0
        %1065 = vmatprep.mubr.bf16.mxu0 0
        %1066 = vmatmul.mubr.bf16.gmra.mrb[0].mxu0 %v1028
        %v1067 = vpop.f32.mrb[0].mxu0
        %v1068 = vadd.f32 0.0, %v1067
        %v1069 = vpop.f32.mrb[0].mxu0
        %v1070 = vpop.f32.mrb[0].mxu0
        %v1071 = vadd.f32 0.0, %v1070
        %v1072 = vpop.f32.mrb[0].mxu0
        %1073 = vdwg.mxu0
        %v1074 = vsel %vm952, %v1068, -inf
        %1075 = vmax.xlane.f32.xlu0 %v1074
        %v1076 = vpop.xlane.xlu0 %1075
        %v1077 = vsel %vm952, %v1071, -inf
        %1078 = vmax.xlane.f32.xlu0 %v1077
        %v1079 = vpop.xlane.xlu0 %1078
        %v1080 = vsub.f32 %v1068, %v1076
        %v1081 = vsub.f32 %v1071, %v1079
        %v1082 = vmul.f32 %v1080, 1.442695
        %v1083 = vpow.pop %v1082
        %v1084 = vmul.f32 %v1081, 1.442695
        %v1085 = vpow.pop %v1084
        %v1086 = vsel %vm952, %v1083, 0.0
        %1087 = vadd.xlane.f32.xlu0 %v1086
        %v1088 = vpop.xlane.xlu0 %1087
        %v1089 = vsel %vm952, %v1085, 0.0
        %1090 = vadd.xlane.f32.xlu0 %v1089
        %v1091 = vpop.xlane.xlu0 %1090
        %v1092 = vpack.c.bf16 %v1085, %v1083
        %1094 = vrot.lane.b32.xlu0 %v903, 64
        %v1095 = vpop.permute.xlu0 %1094
        %v1098 = vsel %vm952, %v1092, 0
        %1100 = vmatprep.subr.bf16.mxu0 0
        %1101 = vmatpush1.bf16.msra.mxu0 %v1095
        %1102 = vmatprep.subr.bf16.mxu0 0
        %1103 = vmatpush1.bf16.msra.mxu0 0
        %1104 = vmatprep.subr.bf16.mxu0 0
        %1105 = vmatpush1.bf16.msra.mxu0 0
        %1106 = vmatprep.subr.bf16.mxu0 0
        %1107 = vmatpush1.bf16.msra.mxu0 0
        %1108 = vmatprep.subr.bf16.mxu0 0
        %1109 = vmatpush1.bf16.msra.mxu0 0
        %1110 = vmatprep.subr.bf16.mxu0 0
        %1111 = vmatpush1.bf16.msra.mxu0 0
        %1112 = vmatprep.subr.bf16.mxu0 0
        %1113 = vmatpush1.bf16.msra.mxu0 0
        %1114 = vmatprep.subr.bf16.mxu0 0
        %1115 = vmatpush1.bf16.msra.mxu0 0
        %1116 = vmatprep.subr.bf16.mxu0 0
        %1117 = vmatpush1.bf16.msra.mxu0 0
        %1118 = vmatprep.subr.bf16.mxu0 0
        %1119 = vmatpush1.bf16.msra.mxu0 0
        %1120 = vmatprep.subr.bf16.mxu0 0
        %1121 = vmatpush1.bf16.msra.mxu0 0
        %1122 = vmatprep.subr.bf16.mxu0 0
        %1123 = vmatpush1.bf16.msra.mxu0 0
        %1124 = vmatprep.subr.bf16.mxu0 0
        %1125 = vmatpush1.bf16.msra.mxu0 0
        %1126 = vmatprep.subr.bf16.mxu0 0
        %1127 = vmatpush1.bf16.msra.mxu0 0
        %1128 = vmatprep.subr.bf16.mxu0 0
        %1129 = vmatpush1.bf16.msra.mxu0 0
        %1130 = vmatprep.subr.bf16.mxu0 0
        %1131 = vmatpush1.bf16.msra.mxu0 0
        %1132 = vmatprep.mubr.bf16.mxu0 0
        %1133 = vmatmul.mubr.bf16.gmra.mrb[0].mxu0 %v1098
        %v1134 = vpop.f32.mrb[0].mxu0
        %v1135 = vadd.f32 0.0, %v1134
        %v1136 = vpop.f32.mrb[0].mxu0
        %v1137 = vpop.f32.mrb[0].mxu0
        %v1138 = vadd.f32 0.0, %v1137
        %v1139 = vpop.f32.mrb[0].mxu0
        %1140 = vdwg.mxu0
        %v1141 = vrcp.pop %v1088
        %v1142 = vrcp.pop %v1091
        %v1143 = vmul.f32 %v1135, %v1141
        %v1144 = vmul.f32 %v1138, %v1142
        %v1145 = vpack.c.bf16 %v1144, %v1143
        %1147 = vrot.lane.b32.xlu0 %v1145, 64
        %v1148 = vpop.permute.xlu0 %1147
        %v1151 = vsel %vm904, %v1020, %v1148
        %v1153 = vld [vmem:[#allocation13] sm:$0xf]
        %v1154 = vld [vmem:[#allocation13 + $0x4] sm:$0xf]
        %v1155 = vld [vmem:[#allocation13 + $0x8] sm:$0xf]
        %v1156 = vld [vmem:[#allocation13 + $0xc] sm:$0xf]
        %v1157 = vld [vmem:[#allocation13 + $0x10] sm:$0xf]
        %v1158 = vld [vmem:[#allocation13 + $0x14] sm:$0xf]
        %v1159 = vld [vmem:[#allocation13 + $0x18] sm:$0xf]
        %v1160 = vld [vmem:[#allocation13 + $0x1c] sm:$0xf]
        %v1161 = vld [vmem:[#allocation13 + $0x20] sm:$0xf]
        %v1162 = vld [vmem:[#allocation13 + $0x24] sm:$0xf]
        %v1163 = vld [vmem:[#allocation13 + $0x28] sm:$0xf]
        %v1164 = vld [vmem:[#allocation13 + $0x2c] sm:$0xf]
        %v1165 = vld [vmem:[#allocation13 + $0x30] sm:$0xf]
        %v1166 = vld [vmem:[#allocation13 + $0x34] sm:$0xf]
        %v1167 = vld [vmem:[#allocation13 + $0x38] sm:$0xf]
        %v1168 = vld [vmem:[#allocation13 + $0x3c] sm:$0xf]
        %v1169 = vld [vmem:[%s10] sm:$0x1]
        %v1171 = vlaneseq
        %v1172 = vshrl.u32 %v1171, 7
        %v1173 = vsub.s32 0, %v1172
        %v1174 = vrot.slane %v1169, %v1173
        %v1192 = vunpack.c.l.b16 %v1153
        %v1193 = vunpack.c.l.b16 %v1154
        %v1194 = vunpack.c.l.b16 %v1155
        %v1195 = vunpack.c.l.b16 %v1156
        %v1196 = vunpack.c.l.b16 %v1157
        %v1197 = vunpack.c.l.b16 %v1158
        %v1198 = vunpack.c.l.b16 %v1159
        %v1199 = vunpack.c.l.b16 %v1160
        %v1200 = vunpack.c.l.b16 %v1161
        %v1201 = vunpack.c.l.b16 %v1162
        %v1202 = vunpack.c.l.b16 %v1163
        %v1203 = vunpack.c.l.b16 %v1164
        %v1204 = vunpack.c.l.b16 %v1165
        %v1205 = vunpack.c.l.b16 %v1166
        %v1206 = vunpack.c.l.b16 %v1167
        %v1207 = vunpack.c.l.b16 %v1168
        %v1208 = vpack.c.b16 %v1193, %v1192
        %v1209 = vpack.c.b16 %v1195, %v1194
        %v1210 = vpack.c.b16 %v1197, %v1196
        %v1211 = vpack.c.b16 %v1199, %v1198
        %v1212 = vpack.c.b16 %v1201, %v1200
        %v1213 = vpack.c.b16 %v1203, %v1202
        %v1214 = vpack.c.b16 %v1205, %v1204
        %v1215 = vpack.c.b16 %v1207, %v1206
        %1224 = vmatprep.subr.bf16.mxu0 0
        %1225 = vmatpush1.bf16.msra.mxu0 %v1208
        %1226 = vmatprep.subr.bf16.mxu0 0
        %1227 = vmatpush1.bf16.msra.mxu0 %v1209
        %1228 = vmatprep.subr.bf16.mxu0 0
        %1229 = vmatpush1.bf16.msra.mxu0 %v1210
        %1230 = vmatprep.subr.bf16.mxu0 0
        %1231 = vmatpush1.bf16.msra.mxu0 %v1211
        %1232 = vmatprep.subr.bf16.mxu0 0
        %1233 = vmatpush1.bf16.msra.mxu0 %v1212
        %1234 = vmatprep.subr.bf16.mxu0 0
        %1235 = vmatpush1.bf16.msra.mxu0 %v1213
        %1236 = vmatprep.subr.bf16.mxu0 0
        %1237 = vmatpush1.bf16.msra.mxu0 %v1214
        %1238 = vmatprep.subr.bf16.mxu0 0
        %1239 = vmatpush1.bf16.msra.mxu0 %v1215
        %1240 = vmatprep.subr.bf16.mxu0 0
        %1241 = vmatpush1.bf16.msra.mxu0 0
        %1242 = vmatprep.subr.bf16.mxu0 0
        %1243 = vmatpush1.bf16.msra.mxu0 0
        %1244 = vmatprep.subr.bf16.mxu0 0
        %1245 = vmatpush1.bf16.msra.mxu0 0
        %1246 = vmatprep.subr.bf16.mxu0 0
        %1247 = vmatpush1.bf16.msra.mxu0 0
        %1248 = vmatprep.subr.bf16.mxu0 0
        %1249 = vmatpush1.bf16.msra.mxu0 0
        %1250 = vmatprep.subr.bf16.mxu0 0
        %1251 = vmatpush1.bf16.msra.mxu0 0
        %1252 = vmatprep.subr.bf16.mxu0 0
        %1253 = vmatpush1.bf16.msra.mxu0 0
        %1254 = vmatprep.subr.bf16.mxu0 0
        %1255 = vmatpush1.bf16.msra.mxu0 0
        %1256 = vmatprep.mubr.bf16.mxu0 0
        %1257 = vmatmul.mubr.bf16.gmra.mrb[0].mxu0 %v1151
        %v1258 = vpop.f32.mrb[0].mxu0
        %v1259 = vadd.f32 %v1174, %v1258
        %v1260 = vpop.f32.mrb[0].mxu0
        %v1261 = vpop.f32.mrb[0].mxu0
        %v1262 = vadd.f32 %v1174, %v1261
        %v1263 = vpop.f32.mrb[0].mxu0
        %1264 = vdwg.mxu0
        %1265 = vst [vmem:[%s539] sm:$0xff] %v1259
        %1266 = vst [vmem:[%s539 + $0x8] sm:$0xff] %v1262
        %s1267 = sand.u32 %s287, 1
        %s1268 = scalar_lea.sflag [#allocation4], %s1267
        %s1269 = sand.u32 %s287, 1
        %s1270 = smul.addr %s1269, 16
        %s1271 = scalar_lea.vmem [#allocation14], %s1270
        // Predicated region
        $region93: #{tpu_custom_call.1} parent=63 // pred_check
          %p1272 = pneg %p297
        $region94: #{tpu_custom_call.1} parent=63 // pred_check_branch
          %1274 = sbr.rel (%p1272) target = $region96
        $region95: #{tpu_custom_call.1} parent=63 // pred_region
          %s1276 = ssub.s32 256, 256
          %1277 = vsyncadd %s1268, %s1276
          %s1278 = smul.addr %s33, 2
          %s1279 = smul.addr %s1278, 128
          %s1280 = scalar_lea.hbm %s11, %s1279
          %s1281 = sshll.u32 %s1271, 4
          %s1282 = int_to_ptr.vmem [resolvable:$true] %s1281
          %1287 = dma.vmem_to_hbm [thread:$0]  %s1282, 256, %s1280, %s1268, 128, 128, 8
        $region96: #{tpu_custom_call.1} parent=63 // pred_fallthru
          _
      $region64: #{tpu_custom_call.1} parent=5 // pred_fallthru
        _
      %p1288 = scmp.le.s32.totalorder 2, %s28
      // Predicated region
      $region97: #{tpu_custom_call.1} parent=5 // pred_check
        %p1289 = pneg %p1288
      $region98: #{tpu_custom_call.1} parent=5 // pred_check_branch
        %1291 = sbr.rel (%p1289) target = $region100
      $region99: #{tpu_custom_call.1} parent=5 // pred_region
        %s1292 = ssub.s32 %s28, 2
        // Predicated region
        $region101: #{tpu_custom_call.1} parent=99 // pred_check
          %p1293 = pneg %p303
        $region102: #{tpu_custom_call.1} parent=99 // pred_check_branch
          %1295 = sbr.rel (%p1293) target = $region104
        $region103: #{tpu_custom_call.1} parent=99 // pred_region
          %s1296 = sand.u32 %s288, 1
          %s1297 = scalar_lea.sflag [#allocation4], %s1296
          %s1298 = sand.u32 %s288, 1
          %s1299 = smul.addr %s1298, 16
          %s1300 = scalar_lea.vmem [#allocation14], %s1299
          %1301 = dma.done %s1297, 256
        $region104: #{tpu_custom_call.1} parent=99 // pred_fallthru
          _
      $region100: #{tpu_custom_call.1} parent=5 // pred_fallthru
        _
    $region6: #{tpu_custom_call.1} parent=1 // loop_footer
      %s32 = sadd.s32 1, %s28
    $region7: #{tpu_custom_call.1} parent=1 // loop_footer_branch
      %27 = sbr.rel target = $region3
    $region8: #{tpu_custom_call.1} parent=1 // loop_exit
      _
    %1302 = vsyncpa [#allocation3], 1
    %s1303 = scalar_lea.sflag [#allocation3], 1
    %1304 = vsyncpa %s1303, 1
    %1305 = vsyncpa [#allocation6], 1
    %s1306 = scalar_lea.sflag [#allocation6], 1
    %1307 = vsyncpa %s1306, 1
    %1308 = vsyncpa [#allocation9], 1
    %1309 = vsyncpa [#allocation12], 1
    %1310 = vsyncpa [#allocation4], 1
    %s1311 = scalar_lea.sflag [#allocation4], 1
    %1312 = vsyncpa %s1311, 1

</llo_original>
